<compile_context>
chip_gen: v5e
topology: v5e:2x2
jax: 0.10.0
libtpu: 0.0.40
codegen_flags: <defaults>
</compile_context>

<pallas_src>
import functools
import math

import jax
import jax.numpy as jnp
from jax import lax
from jax.experimental import pallas as pl
from jax.experimental.pallas import tpu as pltpu

LANES = 128  # padded lane width for the MLP head


# ------------------------------ fused kernel -------------------------------

def _fused_kernel(x_ref, wc_ref, bc_ref, w1_ref, b1_ref, w2_ref, b2_ref,
                  o_ref, acc_ref, *, NB, H, KH, WPC, LW):
    """One grid step = NB images: conv3x3 + ReLU + GAP + Linear-ReLU-Linear."""
    M = NB * H
    x = x_ref[...]                                       # (NB, HP, WPC) bf16

    # --- Conv2d as KH banded matmuls.  wc_ref[dy] maps a full padded row
    # (WP*C_in lanes) to the lane-dense conv output row (W*C_out = 128 lanes),
    # with all KW horizontal taps folded into the band -> no lane shifts.
    for dy in range(KH):
        lhs = x[:, dy:dy + H, :].reshape(M, WPC)         # (M, WPC) bf16
        part = jnp.dot(lhs, wc_ref[dy],
                       preferred_element_type=jnp.float32)   # (M, LW) f32
        if dy == 0:
            acc_ref[...] = part
        else:
            acc_ref[...] = acc_ref[...] + part

    # --- bias + ReLU in f32 (VPU), then global average pool.  The lane
    # unpacking and the 1/(H*W) scale are folded into w1 (zero extra ops).
    conv = jnp.maximum(acc_ref[...] + bc_ref[...], 0.0)      # (M, LW)
    r = jnp.sum(conv.reshape(NB, H, LW), axis=1)             # (NB, LW)

    # --- classify head: Linear -> ReLU -> Linear (lane-padded to 128, f32).
    h = jnp.maximum(
        jnp.dot(r, w1_ref[...], preferred_element_type=jnp.float32)
        + b1_ref[...], 0.0)                                  # (NB, LANES)
    o_ref[0] = (jnp.dot(h, w2_ref[...], preferred_element_type=jnp.float32)
                + b2_ref[...])                               # (NB, LANES)


# ------------------------------- parameters --------------------------------

def init_params(key, c_in=4, c_conv=8, hidden=32, num_classes=10, k=3):
    """Deterministic kaiming_normal_-style init (no checkpoint load)."""
    k1, k2, k3 = jax.random.split(key, 3)
    fan_conv = c_in * k * k
    conv_w = jax.random.normal(k1, (c_conv, c_in, k, k), jnp.float32) * math.sqrt(
        2.0 / fan_conv)
    conv_b = jnp.zeros((c_conv,), jnp.float32)
    w1 = jax.random.normal(k2, (c_conv, hidden), jnp.float32) * math.sqrt(2.0 / c_conv)
    b1 = jnp.zeros((hidden,), jnp.float32)
    # the re-initialized final Linear from TransferLearningModel.__init__
    w2 = jax.random.normal(k3, (hidden, num_classes), jnp.float32) * math.sqrt(
        2.0 / hidden)
    b2 = jnp.zeros((num_classes,), jnp.float32)
    return dict(conv_w=conv_w, conv_b=conv_b, w1=w1, b1=b1, w2=w2, b2=b2)


def pack_params(params, *, img_h, img_w):
    """One-time packing of weights into the kernel's resident layout."""
    conv_w = params["conv_w"].astype(jnp.float32)
    conv_b = params["conv_b"].astype(jnp.float32)
    w1, b1 = params["w1"], params["b1"]
    w2, b2 = params["w2"], params["b2"]
    c_out, c_in, kh, kw = conv_w.shape
    hidden = w1.shape[1]
    num_classes = w2.shape[1]
    pw = kw // 2
    wp = img_w + 2 * pw
    wpc = wp * c_in
    lw = img_w * c_out

    # Banded conv weights: wc[dy, (y+dx)*C_in + ci, y*C_out + co] = w[co,ci,dy,dx]
    wt = conv_w.transpose(2, 3, 1, 0)                    # (KH, KW, C_in, C_out)
    wc = jnp.zeros((kh, wpc, lw), jnp.float32)
    for dy in range(kh):
        band = jnp.zeros((wpc, lw), jnp.float32)
        for dx in range(kw):
            e = jnp.eye(wp, img_w, k=-dx, dtype=jnp.float32)   # e[x,y]=1 iff x==y+dx
            band = band + jnp.einsum("xy,io->xiyo", e, wt[dy, dx]).reshape(wpc, lw)
        wc = wc.at[dy].set(band)
    wc = wc.astype(jnp.bfloat16)                          # MXU-native, half the VMEM

    bc = jnp.tile(conv_b, img_w)[None, :]                 # (1, LW) f32

    # Head weights: fold GAP (1/(H*W)) + lane unpacking into w1; pad to 128 lanes.
    w1_big = jnp.zeros((lw, LANES), jnp.float32).at[:, :hidden].set(
        jnp.tile(w1, (img_w, 1)) / float(img_h * img_w))
    b1_big = jnp.zeros((1, LANES), jnp.float32).at[0, :hidden].set(b1)
    w2_big = jnp.zeros((LANES, LANES), jnp.float32).at[:hidden, :num_classes].set(w2)
    b2_big = jnp.zeros((1, LANES), jnp.float32).at[0, :num_classes].set(b2)

    return dict(wc=wc, bc=bc, w1=w1_big, b1=b1_big, w2=w2_big, b2=b2_big)


# ------------------------------ forward (JAX) -------------------------------

@functools.partial(jax.jit, static_argnames=("num_classes",))
def transfer_learning_forward(packed, x, *, num_classes=10):
    """Equivalent of TransferLearningModel.forward(x); x is NCHW float32."""
    n, c_in, h, w = x.shape
    kh, wpc, lw = packed["wc"].shape
    kw = kh
    ph, pw = kh // 2, kw // 2
    hp = h + 2 * ph
    assert wpc == (w + 2 * pw) * c_in, "packed weights don't match image width"

    # NB images per grid step: target M = NB*H ~ 256 sublanes (fills the MXU,
    # amortizes per-step overhead) but keep >= 2 grid steps for v7x megacore.
    nb_target = max(1, 256 // h)
    nb = max(1, min(nb_target, (n + 1) // 2))
    grid = pl.cdiv(n, nb)
    n_pad = grid * nb

    # NCHW -> spatially padded, channel-minor (N, HP, WP*C_in), bf16 input DMA.
    x_pad = jnp.pad(x, ((0, n_pad - n), (0, 0), (ph, ph), (pw, pw)))
    x_flat = x_pad.transpose(0, 2, 3, 1).reshape(n_pad, hp, wpc).astype(jnp.bfloat16)

    kernel = functools.partial(_fused_kernel, NB=nb, H=h, KH=kh, WPC=wpc, LW=lw)

    out = pl.pallas_call(
        kernel,
        out_shape=jax.ShapeDtypeStruct((grid, nb, LANES), jnp.float32),
        grid=(grid,),
        in_specs=[
            pl.BlockSpec((nb, hp, wpc), lambda i: (i, 0, 0)),        # NB images
            pl.BlockSpec((kh, wpc, lw), lambda i: (0, 0, 0)),        # resident
            pl.BlockSpec((1, lw), lambda i: (0, 0)),
            pl.BlockSpec((lw, LANES), lambda i: (0, 0)),
            pl.BlockSpec((1, LANES), lambda i: (0, 0)),
            pl.BlockSpec((LANES, LANES), lambda i: (0, 0)),
            pl.BlockSpec((1, LANES), lambda i: (0, 0)),
        ],
        out_specs=pl.BlockSpec((1, nb, LANES), lambda i: (i, 0, 0)),
        scratch_shapes=[pltpu.VMEM((nb * h, lw), jnp.float32)],      # conv acc
        compiler_params=pltpu.CompilerParams(
            dimension_semantics=("parallel",),       # batch blocks across TCs
            vmem_limit_bytes=32 * 1024 * 1024,       # safe on all gens (<64 MiB)
        ),
    )(x_flat, packed["wc"], packed["bc"], packed["w1"], packed["b1"],
      packed["w2"], packed["b2"])

    return out.reshape(n_pad, LANES)[:n, :num_classes]


# ---------------------------- pure-JAX reference ----------------------------

def reference_forward(params, x):
    conv = lax.conv_general_dilated(
        x, params["conv_w"], window_strides=(1, 1), padding="SAME",
        dimension_numbers=("NCHW", "OIHW", "NCHW"))
    conv = jax.nn.relu(conv + params["conv_b"][None, :, None, None])
    pooled = conv.mean(axis=(2, 3))
    hdn = jax.nn.relu(pooled @ params["w1"] + params["b1"])
    return hdn @ params["w2"] + params["b2"]


# --------------------------------- driver ----------------------------------

if __name__ == "__main__":
    key = jax.random.PRNGKey(0)
    kp, kx = jax.random.split(key)

    params = init_params(kp, c_in=4, c_conv=8, hidden=32, num_classes=10, k=3)
    # batch 32 -> NB=16 (M = 256 rows per step) and a 2-step "parallel" grid
    x = jax.random.normal(kx, (32, 4, 16, 16), jnp.float32)       # NCHW

    packed = pack_params(params, img_h=16, img_w=16)  # once, outside the jit

    out = transfer_learning_forward(packed, x, num_classes=10)
    out = jax.block_until_ready(out)

    assert out.shape == (32, 10) and out.dtype == jnp.float32
    ref = reference_forward(params, x)
    # bf16 conv inputs/weights (f32 accumulate) => bf16-level tolerance vs f32 ref
    assert bool(jnp.allclose(out, ref, rtol=2e-2, atol=2e-2)), "mismatch vs reference"
    print("KERNEL_OK")
</pallas_src>

<mosaic_0001>
module attributes {stable_mosaic.version = 11 : i64} {
  func.func @_fused_kernel(%arg0: i32, %arg1: memref<16x18x72xbf16, #tpu.memory_space<vmem>>, %arg2: memref<3x72x128xbf16, #tpu.memory_space<vmem>>, %arg3: memref<1x128xf32, #tpu.memory_space<vmem>>, %arg4: memref<128x128xf32, #tpu.memory_space<vmem>>, %arg5: memref<1x128xf32, #tpu.memory_space<vmem>>, %arg6: memref<128x128xf32, #tpu.memory_space<vmem>>, %arg7: memref<1x128xf32, #tpu.memory_space<vmem>>, %arg8: memref<1x16x128xf32, #tpu.memory_space<vmem>>, %arg9: memref<256x128xf32, #tpu.memory_space<vmem>>) attributes {dimension_semantics = [#tpu.dimension_semantics<parallel>], iteration_bounds = array<i64: 2>, scalar_prefetch = 0 : i64, scratch_operands = 1 : i64, tpu.core_type = #tpu.core_type<tc>, window_params = [{transform_indices = @transform_0, window_bounds = array<i64: 16, 18, 72>}, {pipeline_mode = #tpu.pipeline_mode<synchronous>, transform_indices = @transform_1, window_bounds = array<i64: 3, 72, 128>}, {pipeline_mode = #tpu.pipeline_mode<synchronous>, transform_indices = @transform_2, window_bounds = array<i64: 1, 128>}, {pipeline_mode = #tpu.pipeline_mode<synchronous>, transform_indices = @transform_3, window_bounds = array<i64: 128, 128>}, {pipeline_mode = #tpu.pipeline_mode<synchronous>, transform_indices = @transform_4, window_bounds = array<i64: 1, 128>}, {pipeline_mode = #tpu.pipeline_mode<synchronous>, transform_indices = @transform_5, window_bounds = array<i64: 128, 128>}, {pipeline_mode = #tpu.pipeline_mode<synchronous>, transform_indices = @transform_6, window_bounds = array<i64: 1, 128>}, {transform_indices = @transform_7, window_bounds = array<i64: 1, 16, 128>}]} {
    %c0 = arith.constant 0 : index
    %c0_0 = arith.constant 0 : index
    %c0_1 = arith.constant 0 : index
    %0 = vector.load %arg1[%c0, %c0_0, %c0_1] : memref<16x18x72xbf16, #tpu.memory_space<vmem>>, vector<16x18x72xbf16>
    %1 = vector.extract_strided_slice %0 {offsets = [0, 0, 0], sizes = [16, 16, 72], strides = [1, 1, 1]} : vector<16x18x72xbf16> to vector<16x16x72xbf16>
    %2 = vector.shape_cast %1 : vector<16x16x72xbf16> to vector<256x72xbf16>
    %c0_2 = arith.constant 0 : index
    %c0_3 = arith.constant 0 : index
    %c0_4 = arith.constant 0 : index
    %3 = vector.load %arg2[%c0_2, %c0_3, %c0_4] : memref<3x72x128xbf16, #tpu.memory_space<vmem>>, vector<1x72x128xbf16>
    %4 = vector.shape_cast %3 : vector<1x72x128xbf16> to vector<72x128xbf16>
    %cst = arith.constant dense<0.000000e+00> : vector<256x128xf32>
    %5 = tpu.matmul %2, %4, %cst {dimension_numbers = #tpu.dot_dimension_numbers<[1], [0], [0], [1], [0, 0, 1, 1], [], []>} : vector<256x72xbf16>, vector<72x128xbf16>, vector<256x128xf32> -> vector<256x128xf32>
    %c0_5 = arith.constant 0 : index
    %c0_6 = arith.constant 0 : index
    %6 = vector.load %arg9[%c0_5, %c0_6] : memref<256x128xf32, #tpu.memory_space<vmem>>, vector<256x128xf32>
    tpu.vector_store %arg9[%c0_5, %c0_6], %5 {strides = array<i32>} : memref<256x128xf32, #tpu.memory_space<vmem>>, vector<256x128xf32>,
    %7 = vector.extract_strided_slice %0 {offsets = [0, 1, 0], sizes = [16, 16, 72], strides = [1, 1, 1]} : vector<16x18x72xbf16> to vector<16x16x72xbf16>
    %8 = vector.shape_cast %7 : vector<16x16x72xbf16> to vector<256x72xbf16>
    %c1 = arith.constant 1 : index
    %c0_7 = arith.constant 0 : index
    %c0_8 = arith.constant 0 : index
    %9 = vector.load %arg2[%c1, %c0_7, %c0_8] : memref<3x72x128xbf16, #tpu.memory_space<vmem>>, vector<1x72x128xbf16>
    %10 = vector.shape_cast %9 : vector<1x72x128xbf16> to vector<72x128xbf16>
    %cst_9 = arith.constant dense<0.000000e+00> : vector<256x128xf32>
    %11 = tpu.matmul %8, %10, %cst_9 {dimension_numbers = #tpu.dot_dimension_numbers<[1], [0], [0], [1], [0, 0, 1, 1], [], []>} : vector<256x72xbf16>, vector<72x128xbf16>, vector<256x128xf32> -> vector<256x128xf32>
    %c0_10 = arith.constant 0 : index
    %c0_11 = arith.constant 0 : index
    %12 = vector.load %arg9[%c0_10, %c0_11] : memref<256x128xf32, #tpu.memory_space<vmem>>, vector<256x128xf32>
    %13 = arith.addf %12, %11 : vector<256x128xf32>
    %c0_12 = arith.constant 0 : index
    %c0_13 = arith.constant 0 : index
    %14 = vector.load %arg9[%c0_12, %c0_13] : memref<256x128xf32, #tpu.memory_space<vmem>>, vector<256x128xf32>
    tpu.vector_store %arg9[%c0_12, %c0_13], %13 {strides = array<i32>} : memref<256x128xf32, #tpu.memory_space<vmem>>, vector<256x128xf32>,
    %15 = vector.extract_strided_slice %0 {offsets = [0, 2, 0], sizes = [16, 16, 72], strides = [1, 1, 1]} : vector<16x18x72xbf16> to vector<16x16x72xbf16>
    %16 = vector.shape_cast %15 : vector<16x16x72xbf16> to vector<256x72xbf16>
    %c2 = arith.constant 2 : index
    %c0_14 = arith.constant 0 : index
    %c0_15 = arith.constant 0 : index
    %17 = vector.load %arg2[%c2, %c0_14, %c0_15] : memref<3x72x128xbf16, #tpu.memory_space<vmem>>, vector<1x72x128xbf16>
    %18 = vector.shape_cast %17 : vector<1x72x128xbf16> to vector<72x128xbf16>
    %cst_16 = arith.constant dense<0.000000e+00> : vector<256x128xf32>
    %19 = tpu.matmul %16, %18, %cst_16 {dimension_numbers = #tpu.dot_dimension_numbers<[1], [0], [0], [1], [0, 0, 1, 1], [], []>} : vector<256x72xbf16>, vector<72x128xbf16>, vector<256x128xf32> -> vector<256x128xf32>
    %c0_17 = arith.constant 0 : index
    %c0_18 = arith.constant 0 : index
    %20 = vector.load %arg9[%c0_17, %c0_18] : memref<256x128xf32, #tpu.memory_space<vmem>>, vector<256x128xf32>
    %21 = arith.addf %20, %19 : vector<256x128xf32>
    %c0_19 = arith.constant 0 : index
    %c0_20 = arith.constant 0 : index
    %22 = vector.load %arg9[%c0_19, %c0_20] : memref<256x128xf32, #tpu.memory_space<vmem>>, vector<256x128xf32>
    tpu.vector_store %arg9[%c0_19, %c0_20], %21 {strides = array<i32>} : memref<256x128xf32, #tpu.memory_space<vmem>>, vector<256x128xf32>,
    %c0_21 = arith.constant 0 : index
    %c0_22 = arith.constant 0 : index
    %23 = vector.load %arg9[%c0_21, %c0_22] : memref<256x128xf32, #tpu.memory_space<vmem>>, vector<256x128xf32>
    %c0_23 = arith.constant 0 : index
    %c0_24 = arith.constant 0 : index
    %24 = vector.load %arg3[%c0_23, %c0_24] : memref<1x128xf32, #tpu.memory_space<vmem>>, vector<1x128xf32>
    %25 = vector.broadcast %24 : vector<1x128xf32> to vector<256x128xf32>
    %26 = arith.addf %23, %25 : vector<256x128xf32>
    %cst_25 = arith.constant 0.000000e+00 : f32
    %27 = vector.broadcast %cst_25 : f32 to vector<256x128xf32>
    %28 = arith.maximumf %26, %27 : vector<256x128xf32>
    %29 = vector.shape_cast %28 : vector<256x128xf32> to vector<16x16x128xf32>
    %cst_26 = arith.constant dense<0.000000e+00> : vector<16x128xf32>
    %30 = vector.multi_reduction <add>, %29, %cst_26 [1] : vector<16x16x128xf32> to vector<16x128xf32>
    %c0_27 = arith.constant 0 : index
    %c0_28 = arith.constant 0 : index
    %31 = vector.load %arg4[%c0_27, %c0_28] : memref<128x128xf32, #tpu.memory_space<vmem>>, vector<128x128xf32>
    %cst_29 = arith.constant dense<0.000000e+00> : vector<16x128xf32>
    %32 = tpu.matmul %30, %31, %cst_29 {dimension_numbers = #tpu.dot_dimension_numbers<[1], [0], [0], [1], [0, 0, 1, 1], [], []>} : vector<16x128xf32>, vector<128x128xf32>, vector<16x128xf32> -> vector<16x128xf32>
    %c0_30 = arith.constant 0 : index
    %c0_31 = arith.constant 0 : index
    %33 = vector.load %arg5[%c0_30, %c0_31] : memref<1x128xf32, #tpu.memory_space<vmem>>, vector<1x128xf32>
    %34 = vector.broadcast %33 : vector<1x128xf32> to vector<16x128xf32>
    %35 = arith.addf %32, %34 : vector<16x128xf32>
    %cst_32 = arith.constant 0.000000e+00 : f32
    %36 = vector.broadcast %cst_32 : f32 to vector<16x128xf32>
    %37 = arith.maximumf %35, %36 : vector<16x128xf32>
    %c0_33 = arith.constant 0 : index
    %c0_34 = arith.constant 0 : index
    %38 = vector.load %arg6[%c0_33, %c0_34] : memref<128x128xf32, #tpu.memory_space<vmem>>, vector<128x128xf32>
    %cst_35 = arith.constant dense<0.000000e+00> : vector<16x128xf32>
    %39 = tpu.matmul %37, %38, %cst_35 {dimension_numbers = #tpu.dot_dimension_numbers<[1], [0], [0], [1], [0, 0, 1, 1], [], []>} : vector<16x128xf32>, vector<128x128xf32>, vector<16x128xf32> -> vector<16x128xf32>
    %c0_36 = arith.constant 0 : index
    %c0_37 = arith.constant 0 : index
    %40 = vector.load %arg7[%c0_36, %c0_37] : memref<1x128xf32, #tpu.memory_space<vmem>>, vector<1x128xf32>
    %41 = vector.broadcast %40 : vector<1x128xf32> to vector<16x128xf32>
    %42 = arith.addf %39, %41 : vector<16x128xf32>
    %c0_38 = arith.constant 0 : index
    %c0_39 = arith.constant 0 : index
    %c0_40 = arith.constant 0 : index
    %43 = vector.load %arg8[%c0_38, %c0_39, %c0_40] : memref<1x16x128xf32, #tpu.memory_space<vmem>>, vector<1x16x128xf32>
    %44 = vector.shape_cast %43 : vector<1x16x128xf32> to vector<16x128xf32>
    %45 = vector.shape_cast %42 : vector<16x128xf32> to vector<1x16x128xf32>
    tpu.vector_store %arg8[%c0_38, %c0_39, %c0_40], %45 {strides = array<i32>} : memref<1x16x128xf32, #tpu.memory_space<vmem>>, vector<1x16x128xf32>,
    return
  }
  func.func @transform_0(%arg0: i32) -> (i32, i32, i32) {
    %c0_i32 = arith.constant 0 : i32
    %c0_i32_0 = arith.constant 0 : i32
    %c0_i32_1 = arith.constant 0 : i32
    return %arg0, %c0_i32, %c0_i32_0 : i32, i32, i32
  }
  func.func @transform_1(%arg0: i32) -> (i32, i32, i32) {
    %c0_i32 = arith.constant 0 : i32
    %c0_i32_0 = arith.constant 0 : i32
    %c0_i32_1 = arith.constant 0 : i32
    %c0_i32_2 = arith.constant 0 : i32
    return %c0_i32, %c0_i32_0, %c0_i32_1 : i32, i32, i32
  }
  func.func @transform_2(%arg0: i32) -> (i32, i32) {
    %c0_i32 = arith.constant 0 : i32
    %c0_i32_0 = arith.constant 0 : i32
    %c0_i32_1 = arith.constant 0 : i32
    return %c0_i32, %c0_i32_0 : i32, i32
  }
  func.func @transform_3(%arg0: i32) -> (i32, i32) {
    %c0_i32 = arith.constant 0 : i32
    %c0_i32_0 = arith.constant 0 : i32
    %c0_i32_1 = arith.constant 0 : i32
    return %c0_i32, %c0_i32_0 : i32, i32
  }
  func.func @transform_4(%arg0: i32) -> (i32, i32) {
    %c0_i32 = arith.constant 0 : i32
    %c0_i32_0 = arith.constant 0 : i32
    %c0_i32_1 = arith.constant 0 : i32
    return %c0_i32, %c0_i32_0 : i32, i32
  }
  func.func @transform_5(%arg0: i32) -> (i32, i32) {
    %c0_i32 = arith.constant 0 : i32
    %c0_i32_0 = arith.constant 0 : i32
    %c0_i32_1 = arith.constant 0 : i32
    return %c0_i32, %c0_i32_0 : i32, i32
  }
  func.func @transform_6(%arg0: i32) -> (i32, i32) {
    %c0_i32 = arith.constant 0 : i32
    %c0_i32_0 = arith.constant 0 : i32
    %c0_i32_1 = arith.constant 0 : i32
    return %c0_i32, %c0_i32_0 : i32, i32
  }
  func.func @transform_7(%arg0: i32) -> (i32, i32, i32) {
    %c0_i32 = arith.constant 0 : i32
    %c0_i32_0 = arith.constant 0 : i32
    %c0_i32_1 = arith.constant 0 : i32
    return %arg0, %c0_i32, %c0_i32_0 : i32, i32, i32
  }
}

</mosaic_0001>

<llo_original>
// kernel: transfer_learning_forward.1
$region0: #{transfer_learning_forward.1}
  #allocation0 [shape = 'u32[]', space=smem, size = 0x4, offset = 0x4, fixed_abs, tag = 'smem constant byte address 0x4 - core index']
  #allocation1 [shape = 'u32[72,128]{1,0:T(1,128)}', space=vmem, size = 0x9000, scoped, tag = 'internal scratch']
  #allocation2 [shape = 'f32[256,128]{1,0:T(8,128)}', space=vmem, size = 0x20000, scoped, tag = 'scratch operand']
  %s0 = inlined_call_operand.vmem [shape: bf16[32,18,72], index: 0, kind: input, shape index: {}]
  %s1 = inlined_call_operand.vmem [shape: bf16[3,72,128], index: 1, kind: input, shape index: {}]
  %s2 = inlined_call_operand.vmem [shape: f32[1,128], index: 2, kind: input, shape index: {}]
  %s3 = inlined_call_operand.vmem [shape: f32[128,128], index: 3, kind: input, shape index: {}]
  %s4 = inlined_call_operand.vmem [shape: f32[1,128], index: 4, kind: input, shape index: {}]
  %s5 = inlined_call_operand.vmem [shape: f32[128,128], index: 5, kind: input, shape index: {}]
  %s6 = inlined_call_operand.vmem [shape: f32[1,128], index: 6, kind: input, shape index: {}]
  %s7 = inlined_call_operand.vmem [shape: f32[2,16,128], index: 7, kind: output, shape index: {}]
  %s8 = sld [smem:[#allocation0]]
  $region61: #{transfer_learning_forward.1} parent=0
    _
  %s10 = ssub.s32 1, %s8
  %s11 = scalar_select 0, %s10, %s8
  loop: start=0, step=1, limit=4
  $region2: #{transfer_learning_forward.1} parent=0 // loop_pre_header
    _
  $region3: #{transfer_learning_forward.1} parent=0 // loop_header
    %s13 = sphi 0, %s17
    %p14 = scmp.ge.s32.totalorder %s13, 4
    %s23 = sphi 0, %s25
    %s26 = sphi 0, %s23
    %s27 = sphi 0, %s26
    %s43 = sphi 0, %s27
    %s47 = sphi 0, %s47
    %s49 = sphi 0, %s47
    %s50 = sphi 0, %s49
    %s64 = sphi 0, %s50
    %s68 = sphi 0, %s68
    %s70 = sphi 0, %s68
    %s71 = sphi 0, %s70
    %s85 = sphi 0, %s71
    %s89 = sphi 0, %s89
    %s91 = sphi 0, %s89
    %s92 = sphi 0, %s91
    %s106 = sphi 0, %s92
    %s110 = sphi 0, %s110
    %s112 = sphi 0, %s110
    %s113 = sphi 0, %s112
    %s127 = sphi 0, %s113
    %s131 = sphi 0, %s131
    %s133 = sphi 0, %s131
    %s134 = sphi 0, %s133
    %s148 = sphi 0, %s134
    %s152 = sphi 0, %s152
    %s154 = sphi 0, %s152
    %s155 = sphi 0, %s154
    %s169 = sphi 0, %s155
    %s175 = sphi 0, %s177
    %s178 = sphi 0, %s175
    %s179 = sphi 0, %s178
    %s195 = sphi 0, %s179
  $region4: #{transfer_learning_forward.1} parent=0 // loop_header_branch
    %16 = sbr.rel (%p14) target = $region8
  $region5: #{transfer_learning_forward.1} parent=0 // loop_body
    %s18 = ssub.s32 %s13, 1
    %s19 = ssub.s32 %s13, 2
    %s20 = sadd.s32 %s13, 1
    %s21 = ssub.s32 %s13, %s20
    %p22 = scmp.eq.s32.totalorder %s21, 0
    %s24 = sadd.s32 %s23, 1
    %s25 = scalar_select %p22, %s23, %s24
    %p28 = pneg %p22
    %p29 = scmp.eq.s32.totalorder %s13, 1
    %p30 = por %p28, %p29
    %p31 = scmp.ne.s32.totalorder %s23, %s26
    %p32 = scmp.eq.s32.totalorder %s13, 0
    %p33 = por %p31, %p32
    %p34 = scmp.ne.s32.totalorder %s23, %s26
    %p35 = scmp.eq.s32.totalorder %s18, 1
    %p36 = por %p34, %p35
    %p37 = scmp.ne.s32.totalorder %s26, %s27
    %p38 = scmp.eq.s32.totalorder %s18, 0
    %p39 = por %p37, %p38
    %p40 = scmp.ne.s32.totalorder %s26, %s27
    %p41 = scmp.eq.s32.totalorder %s19, 1
    %p42 = por %p40, %p41
    %p44 = scmp.ne.s32.totalorder %s27, %s43
    %p45 = scmp.eq.s32.totalorder %s19, 0
    %p46 = por %p44, %p45
    %s48 = sadd.s32 %s47, 1
    %p51 = scmp.eq.s32.totalorder %s13, 1
    %p52 = scmp.ne.s32.totalorder %s47, %s49
    %p53 = scmp.eq.s32.totalorder %s13, 0
    %p54 = por %p52, %p53
    %p55 = scmp.ne.s32.totalorder %s47, %s49
    %p56 = scmp.eq.s32.totalorder %s18, 1
    %p57 = por %p55, %p56
    %p58 = scmp.ne.s32.totalorder %s49, %s50
    %p59 = scmp.eq.s32.totalorder %s18, 0
    %p60 = por %p58, %p59
    %p61 = scmp.ne.s32.totalorder %s49, %s50
    %p62 = scmp.eq.s32.totalorder %s19, 1
    %p63 = por %p61, %p62
    %p65 = scmp.ne.s32.totalorder %s50, %s64
    %p66 = scmp.eq.s32.totalorder %s19, 0
    %p67 = por %p65, %p66
    %s69 = sadd.s32 %s68, 1
    %p72 = scmp.eq.s32.totalorder %s13, 1
    %p73 = scmp.ne.s32.totalorder %s68, %s70
    %p74 = scmp.eq.s32.totalorder %s13, 0
    %p75 = por %p73, %p74
    %p76 = scmp.ne.s32.totalorder %s68, %s70
    %p77 = scmp.eq.s32.totalorder %s18, 1
    %p78 = por %p76, %p77
    %p79 = scmp.ne.s32.totalorder %s70, %s71
    %p80 = scmp.eq.s32.totalorder %s18, 0
    %p81 = por %p79, %p80
    %p82 = scmp.ne.s32.totalorder %s70, %s71
    %p83 = scmp.eq.s32.totalorder %s19, 1
    %p84 = por %p82, %p83
    %p86 = scmp.ne.s32.totalorder %s71, %s85
    %p87 = scmp.eq.s32.totalorder %s19, 0
    %p88 = por %p86, %p87
    %s90 = sadd.s32 %s89, 1
    %p93 = scmp.eq.s32.totalorder %s13, 1
    %p94 = scmp.ne.s32.totalorder %s89, %s91
    %p95 = scmp.eq.s32.totalorder %s13, 0
    %p96 = por %p94, %p95
    %p97 = scmp.ne.s32.totalorder %s89, %s91
    %p98 = scmp.eq.s32.totalorder %s18, 1
    %p99 = por %p97, %p98
    %p100 = scmp.ne.s32.totalorder %s91, %s92
    %p101 = scmp.eq.s32.totalorder %s18, 0
    %p102 = por %p100, %p101
    %p103 = scmp.ne.s32.totalorder %s91, %s92
    %p104 = scmp.eq.s32.totalorder %s19, 1
    %p105 = por %p103, %p104
    %p107 = scmp.ne.s32.totalorder %s92, %s106
    %p108 = scmp.eq.s32.totalorder %s19, 0
    %p109 = por %p107, %p108
    %s111 = sadd.s32 %s110, 1
    %p114 = scmp.eq.s32.totalorder %s13, 1
    %p115 = scmp.ne.s32.totalorder %s110, %s112
    %p116 = scmp.eq.s32.totalorder %s13, 0
    %p117 = por %p115, %p116
    %p118 = scmp.ne.s32.totalorder %s110, %s112
    %p119 = scmp.eq.s32.totalorder %s18, 1
    %p120 = por %p118, %p119
    %p121 = scmp.ne.s32.totalorder %s112, %s113
    %p122 = scmp.eq.s32.totalorder %s18, 0
    %p123 = por %p121, %p122
    %p124 = scmp.ne.s32.totalorder %s112, %s113
    %p125 = scmp.eq.s32.totalorder %s19, 1
    %p126 = por %p124, %p125
    %p128 = scmp.ne.s32.totalorder %s113, %s127
    %p129 = scmp.eq.s32.totalorder %s19, 0
    %p130 = por %p128, %p129
    %s132 = sadd.s32 %s131, 1
    %p135 = scmp.eq.s32.totalorder %s13, 1
    %p136 = scmp.ne.s32.totalorder %s131, %s133
    %p137 = scmp.eq.s32.totalorder %s13, 0
    %p138 = por %p136, %p137
    %p139 = scmp.ne.s32.totalorder %s131, %s133
    %p140 = scmp.eq.s32.totalorder %s18, 1
    %p141 = por %p139, %p140
    %p142 = scmp.ne.s32.totalorder %s133, %s134
    %p143 = scmp.eq.s32.totalorder %s18, 0
    %p144 = por %p142, %p143
    %p145 = scmp.ne.s32.totalorder %s133, %s134
    %p146 = scmp.eq.s32.totalorder %s19, 1
    %p147 = por %p145, %p146
    %p149 = scmp.ne.s32.totalorder %s134, %s148
    %p150 = scmp.eq.s32.totalorder %s19, 0
    %p151 = por %p149, %p150
    %s153 = sadd.s32 %s152, 1
    %p156 = scmp.eq.s32.totalorder %s13, 1
    %p157 = scmp.ne.s32.totalorder %s152, %s154
    %p158 = scmp.eq.s32.totalorder %s13, 0
    %p159 = por %p157, %p158
    %p160 = scmp.ne.s32.totalorder %s152, %s154
    %p161 = scmp.eq.s32.totalorder %s18, 1
    %p162 = por %p160, %p161
    %p163 = scmp.ne.s32.totalorder %s154, %s155
    %p164 = scmp.eq.s32.totalorder %s18, 0
    %p165 = por %p163, %p164
    %p166 = scmp.ne.s32.totalorder %s154, %s155
    %p167 = scmp.eq.s32.totalorder %s19, 1
    %p168 = por %p166, %p167
    %p170 = scmp.ne.s32.totalorder %s155, %s169
    %p171 = scmp.eq.s32.totalorder %s19, 0
    %p172 = por %p170, %p171
    %s173 = ssub.s32 %s13, %s20
    %p174 = scmp.eq.s32.totalorder %s173, 0
    %s176 = sadd.s32 %s175, 1
    %s177 = scalar_select %p174, %s175, %s176
    %p180 = pneg %p174
    %p181 = scmp.eq.s32.totalorder %s13, 1
    %p182 = por %p180, %p181
    %p183 = scmp.ne.s32.totalorder %s175, %s178
    %p184 = scmp.eq.s32.totalorder %s13, 0
    %p185 = por %p183, %p184
    %p186 = scmp.ne.s32.totalorder %s175, %s178
    %p187 = scmp.eq.s32.totalorder %s18, 1
    %p188 = por %p186, %p187
    %p189 = scmp.ne.s32.totalorder %s178, %s179
    %p190 = scmp.eq.s32.totalorder %s18, 0
    %p191 = por %p189, %p190
    %p192 = scmp.ne.s32.totalorder %s178, %s179
    %p193 = scmp.eq.s32.totalorder %s19, 1
    %p194 = por %p192, %p193
    %p196 = scmp.ne.s32.totalorder %s179, %s195
    %p197 = scmp.eq.s32.totalorder %s19, 0
    %p198 = por %p196, %p197
    %p199 = scmp.le.s32.totalorder 1, %s13
    %p200 = scmp.lt.s32.totalorder %s13, 3
    %p201 = pnand %p199, %p200
    %p202 = pneg %p201
    // Predicated region
    $region9: #{transfer_learning_forward.1} parent=5 // pred_check
      _
    $region10: #{transfer_learning_forward.1} parent=5 // pred_check_branch
      %204 = sbr.rel (%p201) target = $region12
    $region11: #{transfer_learning_forward.1} parent=5 // pred_region
      %s205 = ssub.s32 %s13, 1
      // Predicated region
      $region13: #{transfer_learning_forward.1} parent=11 // pred_check
        %p206 = pneg %p60
      $region14: #{transfer_learning_forward.1} parent=11 // pred_check_branch
        %208 = sbr.rel (%p206) target = $region16
      $region15: #{transfer_learning_forward.1} parent=11 // pred_region
        _
      $region16: #{transfer_learning_forward.1} parent=11 // pred_fallthru
        _
      // Predicated region
      $region17: #{transfer_learning_forward.1} parent=11 // pred_check
        %p209 = pneg %p81
      $region18: #{transfer_learning_forward.1} parent=11 // pred_check_branch
        %211 = sbr.rel (%p209) target = $region20
      $region19: #{transfer_learning_forward.1} parent=11 // pred_region
        _
      $region20: #{transfer_learning_forward.1} parent=11 // pred_fallthru
        _
      // Predicated region
      $region21: #{transfer_learning_forward.1} parent=11 // pred_check
        %p212 = pneg %p102
      $region22: #{transfer_learning_forward.1} parent=11 // pred_check_branch
        %214 = sbr.rel (%p212) target = $region24
      $region23: #{transfer_learning_forward.1} parent=11 // pred_region
        _
      $region24: #{transfer_learning_forward.1} parent=11 // pred_fallthru
        _
      // Predicated region
      $region25: #{transfer_learning_forward.1} parent=11 // pred_check
        %p215 = pneg %p123
      $region26: #{transfer_learning_forward.1} parent=11 // pred_check_branch
        %217 = sbr.rel (%p215) target = $region28
      $region27: #{transfer_learning_forward.1} parent=11 // pred_region
        _
      $region28: #{transfer_learning_forward.1} parent=11 // pred_fallthru
        _
      // Predicated region
      $region29: #{transfer_learning_forward.1} parent=11 // pred_check
        %p218 = pneg %p144
      $region30: #{transfer_learning_forward.1} parent=11 // pred_check_branch
        %220 = sbr.rel (%p218) target = $region32
      $region31: #{transfer_learning_forward.1} parent=11 // pred_region
        _
      $region32: #{transfer_learning_forward.1} parent=11 // pred_fallthru
        _
      // Predicated region
      $region33: #{transfer_learning_forward.1} parent=11 // pred_check
        %p221 = pneg %p165
      $region34: #{transfer_learning_forward.1} parent=11 // pred_check_branch
        %223 = sbr.rel (%p221) target = $region36
      $region35: #{transfer_learning_forward.1} parent=11 // pred_region
        _
      $region36: #{transfer_learning_forward.1} parent=11 // pred_fallthru
        _
    $region12: #{transfer_learning_forward.1} parent=5 // pred_fallthru
      _
    %p224 = scmp.lt.s32.totalorder %s13, 2
    // Predicated region
    $region37: #{transfer_learning_forward.1} parent=5 // pred_check
      %p225 = pneg %p224
    $region38: #{transfer_learning_forward.1} parent=5 // pred_check_branch
      %227 = sbr.rel (%p225) target = $region40
    $region39: #{transfer_learning_forward.1} parent=5 // pred_region
      // Predicated region
      $region41: #{transfer_learning_forward.1} parent=39 // pred_check
        %p228 = pneg %p33
      $region42: #{transfer_learning_forward.1} parent=39 // pred_check_branch
        %230 = sbr.rel (%p228) target = $region44
      $region43: #{transfer_learning_forward.1} parent=39 // pred_region
        %s231 = smul.u32 16, %s13
        %p232 = scmp.lt.s32.totalorder %s231, 31
        %s233 = scalar_select %p232, %s231, 31
        %s234 = smul.addr %s233, 3
        %s235 = smul.addr %s234, 4
        %s236 = scalar_lea.vmem %s0, %s235
        %s237 = smul.u32 16, %s13
      $region44: #{transfer_learning_forward.1} parent=39 // pred_fallthru
        _
    $region40: #{transfer_learning_forward.1} parent=5 // pred_fallthru
      _
    %p238 = scmp.le.s32.totalorder 1, %s13
    %p239 = scmp.lt.s32.totalorder %s13, 3
    %p240 = pnand %p238, %p239
    %p241 = pneg %p240
    // Predicated region
    $region45: #{transfer_learning_forward.1} parent=5 // pred_check
      _
    $region46: #{transfer_learning_forward.1} parent=5 // pred_check_branch
      %243 = sbr.rel (%p240) target = $region48
    $region47: #{transfer_learning_forward.1} parent=5 // pred_region
      %s244 = ssub.s32 %s13, 1
      %s245 = smul.u32 16, %s18
      %p246 = scmp.lt.s32.totalorder %s245, 31
      %s247 = scalar_select %p246, %s245, 31
      %s248 = smul.addr %s247, 3
      %s249 = smul.addr %s248, 4
      %s250 = scalar_lea.vmem %s0, %s249
      %p251 = pneg %p39
      %p252 = pneg %p36
      %p253 = pneg %p60
      %p254 = pneg %p57
      %p255 = pneg %p81
      %p256 = pneg %p78
      %p257 = pneg %p102
      %p258 = pneg %p99
      %p259 = pneg %p123
      %p260 = pneg %p120
      %p261 = pneg %p144
      %p262 = pneg %p141
      %p263 = pneg %p165
      %p264 = pneg %p162
      %p265 = pneg %p191
      %p266 = pneg %p188
      %p267 = scmp.lt.s32.totalorder %s18, 1
      %s268 = scalar_select %p267, %s18, 1
      %s269 = smul.addr %s268, 2
      %s270 = smul.addr %s269, 8
      %s271 = scalar_lea.vmem %s7, %s270
      %s272 = smul.u32 16, %s18
      %p273 = scmp.lt.s32.totalorder %s272, 31
      %s274 = scalar_select %p273, %s272, 31
      %s275 = smul.addr %s274, 3
      %s276 = smul.addr %s275, 4
      %s277 = scalar_lea.vmem %s0, %s276
      %s278 = smul.u32 16, %s18
      %p279 = scmp.lt.s32.totalorder %s18, 1
      %s280 = scalar_select %p279, %s18, 1
      %s281 = smul.addr %s280, 2
      %s282 = smul.addr %s281, 8
      %s283 = scalar_lea.vmem %s7, %s282
      %v285 = vld [vmem:[%s277] sm:$0xf]
      %v286 = vld [vmem:[%s277 + $0x4] sm:$0xf]
      %v287 = vld [vmem:[%s277 + $0x8] sm:$0x1]
      %v288 = vld [vmem:[%s277 + $0xc] sm:$0xf]
      %v289 = vld [vmem:[%s277 + $0x10] sm:$0xf]
      %v290 = vld [vmem:[%s277 + $0x14] sm:$0x1]
      %v291 = vld [vmem:[%s277 + $0x18] sm:$0xf]
      %v292 = vld [vmem:[%s277 + $0x1c] sm:$0xf]
      %v293 = vld [vmem:[%s277 + $0x20] sm:$0x1]
      %v294 = vld [vmem:[%s277 + $0x24] sm:$0xf]
      %v295 = vld [vmem:[%s277 + $0x28] sm:$0xf]
      %v296 = vld [vmem:[%s277 + $0x2c] sm:$0x1]
      %v297 = vld [vmem:[%s277 + $0x30] sm:$0xf]
      %v298 = vld [vmem:[%s277 + $0x34] sm:$0xf]
      %v299 = vld [vmem:[%s277 + $0x38] sm:$0x1]
      %v300 = vld [vmem:[%s277 + $0x3c] sm:$0xf]
      %v301 = vld [vmem:[%s277 + $0x40] sm:$0xf]
      %v302 = vld [vmem:[%s277 + $0x44] sm:$0x1]
      %v303 = vld [vmem:[%s277 + $0x48] sm:$0xf]
      %v304 = vld [vmem:[%s277 + $0x4c] sm:$0xf]
      %v305 = vld [vmem:[%s277 + $0x50] sm:$0x1]
      %v306 = vld [vmem:[%s277 + $0x54] sm:$0xf]
      %v307 = vld [vmem:[%s277 + $0x58] sm:$0xf]
      %v308 = vld [vmem:[%s277 + $0x5c] sm:$0x1]
      %v309 = vld [vmem:[%s277 + $0x60] sm:$0xf]
      %v310 = vld [vmem:[%s277 + $0x64] sm:$0xf]
      %v311 = vld [vmem:[%s277 + $0x68] sm:$0x1]
      %v312 = vld [vmem:[%s277 + $0x6c] sm:$0xf]
      %v313 = vld [vmem:[%s277 + $0x70] sm:$0xf]
      %v314 = vld [vmem:[%s277 + $0x74] sm:$0x1]
      %v315 = vld [vmem:[%s277 + $0x78] sm:$0xf]
      %v316 = vld [vmem:[%s277 + $0x7c] sm:$0xf]
      %v317 = vld [vmem:[%s277 + $0x80] sm:$0x1]
      %v318 = vld [vmem:[%s277 + $0x84] sm:$0xf]
      %v319 = vld [vmem:[%s277 + $0x88] sm:$0xf]
      %v320 = vld [vmem:[%s277 + $0x8c] sm:$0x1]
      %v321 = vld [vmem:[%s277 + $0x90] sm:$0xf]
      %v322 = vld [vmem:[%s277 + $0x94] sm:$0xf]
      %v323 = vld [vmem:[%s277 + $0x98] sm:$0x1]
      %v324 = vld [vmem:[%s277 + $0x9c] sm:$0xf]
      %v325 = vld [vmem:[%s277 + $0xa0] sm:$0xf]
      %v326 = vld [vmem:[%s277 + $0xa4] sm:$0x1]
      %v327 = vld [vmem:[%s277 + $0xa8] sm:$0xf]
      %v328 = vld [vmem:[%s277 + $0xac] sm:$0xf]
      %v329 = vld [vmem:[%s277 + $0xb0] sm:$0x1]
      %v330 = vld [vmem:[%s277 + $0xb4] sm:$0xf]
      %v331 = vld [vmem:[%s277 + $0xb8] sm:$0xf]
      %v332 = vld [vmem:[%s277 + $0xbc] sm:$0x1]
      %v333 = vld [vmem:[%s1] sm:$0xf]
      %v334 = vld [vmem:[%s1 + $0x4] sm:$0xf]
      %v335 = vld [vmem:[%s1 + $0x8] sm:$0xf]
      %v336 = vld [vmem:[%s1 + $0xc] sm:$0xf]
      %v337 = vld [vmem:[%s1 + $0x10] sm:$0xf]
      %v338 = vld [vmem:[%s1 + $0x14] sm:$0xf]
      %v339 = vld [vmem:[%s1 + $0x18] sm:$0xf]
      %v340 = vld [vmem:[%s1 + $0x1c] sm:$0xf]
      %v341 = vld [vmem:[%s1 + $0x20] sm:$0xf]
      %v374 = vunpack.c.l.b16 %v285
      %v375 = vunpack.c.l.b16 %v286
      %v376 = vunpack.c.l.b16 %v288
      %v377 = vunpack.c.l.b16 %v289
      %v378 = vunpack.c.l.b16 %v291
      %v379 = vunpack.c.l.b16 %v292
      %v380 = vunpack.c.l.b16 %v294
      %v381 = vunpack.c.l.b16 %v295
      %v382 = vunpack.c.l.b16 %v297
      %v383 = vunpack.c.l.b16 %v298
      %v384 = vunpack.c.l.b16 %v300
      %v385 = vunpack.c.l.b16 %v301
      %v386 = vunpack.c.l.b16 %v303
      %v387 = vunpack.c.l.b16 %v304
      %v388 = vunpack.c.l.b16 %v306
      %v389 = vunpack.c.l.b16 %v307
      %v390 = vunpack.c.l.b16 %v309
      %v391 = vunpack.c.l.b16 %v310
      %v392 = vunpack.c.l.b16 %v312
      %v393 = vunpack.c.l.b16 %v313
      %v394 = vunpack.c.l.b16 %v315
      %v395 = vunpack.c.l.b16 %v316
      %v396 = vunpack.c.l.b16 %v318
      %v397 = vunpack.c.l.b16 %v319
      %v398 = vunpack.c.l.b16 %v321
      %v399 = vunpack.c.l.b16 %v322
      %v400 = vunpack.c.l.b16 %v324
      %v401 = vunpack.c.l.b16 %v325
      %v402 = vunpack.c.l.b16 %v327
      %v403 = vunpack.c.l.b16 %v328
      %v404 = vunpack.c.l.b16 %v330
      %v405 = vunpack.c.l.b16 %v331
      %v406 = vpack.c.b16 %v375, %v374
      %v407 = vpack.c.b16 %v377, %v376
      %v408 = vpack.c.b16 %v379, %v378
      %v409 = vpack.c.b16 %v381, %v380
      %v410 = vpack.c.b16 %v383, %v382
      %v411 = vpack.c.b16 %v385, %v384
      %v412 = vpack.c.b16 %v387, %v386
      %v413 = vpack.c.b16 %v389, %v388
      %v414 = vpack.c.b16 %v391, %v390
      %v415 = vpack.c.b16 %v393, %v392
      %v416 = vpack.c.b16 %v395, %v394
      %v417 = vpack.c.b16 %v397, %v396
      %v418 = vpack.c.b16 %v399, %v398
      %v419 = vpack.c.b16 %v401, %v400
      %v420 = vpack.c.b16 %v403, %v402
      %v421 = vpack.c.b16 %v405, %v404
      %v431 = vunpack.c.l.b16 %v333
      %v432 = vunpack.c.l.b16 %v334
      %v433 = vunpack.c.l.b16 %v335
      %v434 = vunpack.c.l.b16 %v336
      %v435 = vunpack.c.l.b16 %v337
      %v436 = vunpack.c.l.b16 %v338
      %v437 = vunpack.c.l.b16 %v339
      %v438 = vunpack.c.l.b16 %v340
      %v439 = vunpack.c.l.b16 %v341
      %v440 = vpack.c.b16 %v432, %v431
      %v441 = vpack.c.b16 %v434, %v433
      %v442 = vpack.c.b16 %v436, %v435
      %v443 = vpack.c.b16 %v438, %v437
      %v444 = vpack.c.b16 %v439, %v439
      %vm449 = vcmask 588800
      %v451 = vsel %vm449, %v406, 0
      %v454 = vsel %vm449, %v407, 0
      %v457 = vsel %vm449, %v408, 0
      %v460 = vsel %vm449, %v409, 0
      %v463 = vsel %vm449, %v410, 0
      %v466 = vsel %vm449, %v411, 0
      %v469 = vsel %vm449, %v412, 0
      %v472 = vsel %vm449, %v413, 0
      %v475 = vsel %vm449, %v414, 0
      %v478 = vsel %vm449, %v415, 0
      %v481 = vsel %vm449, %v416, 0
      %v484 = vsel %vm449, %v417, 0
      %v487 = vsel %vm449, %v418, 0
      %v490 = vsel %vm449, %v419, 0
      %v493 = vsel %vm449, %v420, 0
      %v496 = vsel %vm449, %v421, 0
      %vm498 = vcmask 1043456
      %v500 = vsel %vm498, %v444, 0
      %502 = vmatpush.bf16.msra.mxu0 0
      %503 = vmatpush.bf16.msra.mxu0 0
      %504 = vmatpush.bf16.msra.mxu0 0
      %505 = vmatpush.bf16.msra.mxu0 %v500
      %506 = vmatpush.bf16.msra.mxu0 %v443
      %507 = vmatpush.bf16.msra.mxu0 %v442
      %508 = vmatpush.bf16.msra.mxu0 %v441
      %509 = vmatpush.bf16.msra.mxu0 %v440
      %510 = vmatmul.bf16.gmra.mxu0 %v451
      %v511 = vpop.f32.mrf.mxu0
      %v512 = vadd.f32 0.0, %v511
      %v513 = vpop.f32.mrf.mxu0
      %v514 = vadd.f32 0.0, %v513
      %515 = vmatmul.bf16.gmra.mxu0 %v454
      %v516 = vpop.f32.mrf.mxu0
      %v517 = vadd.f32 0.0, %v516
      %v518 = vpop.f32.mrf.mxu0
      %v519 = vadd.f32 0.0, %v518
      %520 = vmatmul.bf16.gmra.mxu0 %v457
      %v521 = vpop.f32.mrf.mxu0
      %v522 = vadd.f32 0.0, %v521
      %v523 = vpop.f32.mrf.mxu0
      %v524 = vadd.f32 0.0, %v523
      %525 = vmatmul.bf16.gmra.mxu0 %v460
      %v526 = vpop.f32.mrf.mxu0
      %v527 = vadd.f32 0.0, %v526
      %v528 = vpop.f32.mrf.mxu0
      %v529 = vadd.f32 0.0, %v528
      %530 = vmatmul.bf16.gmra.mxu0 %v463
      %v531 = vpop.f32.mrf.mxu0
      %v532 = vadd.f32 0.0, %v531
      %v533 = vpop.f32.mrf.mxu0
      %v534 = vadd.f32 0.0, %v533
      %535 = vmatmul.bf16.gmra.mxu0 %v466
      %v536 = vpop.f32.mrf.mxu0
      %v537 = vadd.f32 0.0, %v536
      %v538 = vpop.f32.mrf.mxu0
      %v539 = vadd.f32 0.0, %v538
      %540 = vmatmul.bf16.gmra.mxu0 %v469
      %v541 = vpop.f32.mrf.mxu0
      %v542 = vadd.f32 0.0, %v541
      %v543 = vpop.f32.mrf.mxu0
      %v544 = vadd.f32 0.0, %v543
      %545 = vmatmul.bf16.gmra.mxu0 %v472
      %v546 = vpop.f32.mrf.mxu0
      %v547 = vadd.f32 0.0, %v546
      %v548 = vpop.f32.mrf.mxu0
      %v549 = vadd.f32 0.0, %v548
      %550 = vmatmul.bf16.gmra.mxu0 %v475
      %v551 = vpop.f32.mrf.mxu0
      %v552 = vadd.f32 0.0, %v551
      %v553 = vpop.f32.mrf.mxu0
      %v554 = vadd.f32 0.0, %v553
      %555 = vmatmul.bf16.gmra.mxu0 %v478
      %v556 = vpop.f32.mrf.mxu0
      %v557 = vadd.f32 0.0, %v556
      %v558 = vpop.f32.mrf.mxu0
      %v559 = vadd.f32 0.0, %v558
      %560 = vmatmul.bf16.gmra.mxu0 %v481
      %v561 = vpop.f32.mrf.mxu0
      %v562 = vadd.f32 0.0, %v561
      %v563 = vpop.f32.mrf.mxu0
      %v564 = vadd.f32 0.0, %v563
      %565 = vmatmul.bf16.gmra.mxu0 %v484
      %v566 = vpop.f32.mrf.mxu0
      %v567 = vadd.f32 0.0, %v566
      %v568 = vpop.f32.mrf.mxu0
      %v569 = vadd.f32 0.0, %v568
      %570 = vmatmul.bf16.gmra.mxu0 %v487
      %v571 = vpop.f32.mrf.mxu0
      %v572 = vadd.f32 0.0, %v571
      %v573 = vpop.f32.mrf.mxu0
      %v574 = vadd.f32 0.0, %v573
      %575 = vmatmul.bf16.gmra.mxu0 %v490
      %v576 = vpop.f32.mrf.mxu0
      %v577 = vadd.f32 0.0, %v576
      %v578 = vpop.f32.mrf.mxu0
      %v579 = vadd.f32 0.0, %v578
      %580 = vmatmul.bf16.gmra.mxu0 %v493
      %v581 = vpop.f32.mrf.mxu0
      %v582 = vadd.f32 0.0, %v581
      %v583 = vpop.f32.mrf.mxu0
      %v584 = vadd.f32 0.0, %v583
      %585 = vmatmul.bf16.gmra.mxu0 %v496
      %v586 = vpop.f32.mrf.mxu0
      %v587 = vadd.f32 0.0, %v586
      %v588 = vpop.f32.mrf.mxu0
      %v589 = vadd.f32 0.0, %v588
      %590 = vdwg.mxu0
      %591 = vst [vmem:[#allocation2] sm:$0xff] %v512
      %592 = vst [vmem:[#allocation2 + $0x8] sm:$0xff] %v514
      %593 = vst [vmem:[#allocation2 + $0x10] sm:$0xff] %v517
      %594 = vst [vmem:[#allocation2 + $0x18] sm:$0xff] %v519
      %595 = vst [vmem:[#allocation2 + $0x20] sm:$0xff] %v522
      %596 = vst [vmem:[#allocation2 + $0x28] sm:$0xff] %v524
      %597 = vst [vmem:[#allocation2 + $0x30] sm:$0xff] %v527
      %598 = vst [vmem:[#allocation2 + $0x38] sm:$0xff] %v529
      %599 = vst [vmem:[#allocation2 + $0x40] sm:$0xff] %v532
      %600 = vst [vmem:[#allocation2 + $0x48] sm:$0xff] %v534
      %601 = vst [vmem:[#allocation2 + $0x50] sm:$0xff] %v537
      %602 = vst [vmem:[#allocation2 + $0x58] sm:$0xff] %v539
      %603 = vst [vmem:[#allocation2 + $0x60] sm:$0xff] %v542
      %604 = vst [vmem:[#allocation2 + $0x68] sm:$0xff] %v544
      %605 = vst [vmem:[#allocation2 + $0x70] sm:$0xff] %v547
      %606 = vst [vmem:[#allocation2 + $0x78] sm:$0xff] %v549
      %607 = vst [vmem:[#allocation2 + $0x80] sm:$0xff] %v552
      %608 = vst [vmem:[#allocation2 + $0x88] sm:$0xff] %v554
      %609 = vst [vmem:[#allocation2 + $0x90] sm:$0xff] %v557
      %610 = vst [vmem:[#allocation2 + $0x98] sm:$0xff] %v559
      %611 = vst [vmem:[#allocation2 + $0xa0] sm:$0xff] %v562
      %612 = vst [vmem:[#allocation2 + $0xa8] sm:$0xff] %v564
      %613 = vst [vmem:[#allocation2 + $0xb0] sm:$0xff] %v567
      %614 = vst [vmem:[#allocation2 + $0xb8] sm:$0xff] %v569
      %615 = vst [vmem:[#allocation2 + $0xc0] sm:$0xff] %v572
      %616 = vst [vmem:[#allocation2 + $0xc8] sm:$0xff] %v574
      %617 = vst [vmem:[#allocation2 + $0xd0] sm:$0xff] %v577
      %618 = vst [vmem:[#allocation2 + $0xd8] sm:$0xff] %v579
      %619 = vst [vmem:[#allocation2 + $0xe0] sm:$0xff] %v582
      %620 = vst [vmem:[#allocation2 + $0xe8] sm:$0xff] %v584
      %621 = vst [vmem:[#allocation2 + $0xf0] sm:$0xff] %v587
      %622 = vst [vmem:[#allocation2 + $0xf8] sm:$0xff] %v589
      %vm623 = vsmask.f32 3328
      %vm624 = vsmask.f32 7440
      %vm625 = vmor %vm623, %vm624
      %v627 = vshrl.u32 %v285, 16
      %v629 = vrot.slane %v627, 4
      %v630 = vshll.u32 %v285, 16
      %v632 = vrot.slane %v630, 5
      %v633 = vor.u32 %v629, %v632
      %v634 = vrot.slane %v633, 4
      %v636 = vshll.u32 %v286, 16
      %v638 = vrot.slane %v636, 5
      %v639 = vsel %vm625, %v634, %v638
      %v640 = vshrl.u32 %v286, 16
      %v642 = vrot.slane %v640, 4
      %v643 = vor.u32 %v642, %v638
      %v644 = vrot.slane %v643, 4
      %v646 = vshll.u32 %v287, 16
      %v648 = vrot.slane %v646, 5
      %v649 = vsel %vm625, %v644, %v648
      %v651 = vshrl.u32 %v288, 16
      %v653 = vrot.slane %v651, 4
      %v654 = vshll.u32 %v288, 16
      %v656 = vrot.slane %v654, 5
      %v657 = vor.u32 %v653, %v656
      %v658 = vrot.slane %v657, 4
      %v660 = vshll.u32 %v289, 16
      %v662 = vrot.slane %v660, 5
      %v663 = vsel %vm625, %v658, %v662
      %v664 = vshrl.u32 %v289, 16
      %v666 = vrot.slane %v664, 4
      %v667 = vor.u32 %v666, %v662
      %v668 = vrot.slane %v667, 4
      %v670 = vshll.u32 %v290, 16
      %v672 = vrot.slane %v670, 5
      %v673 = vsel %vm625, %v668, %v672
      %v675 = vshrl.u32 %v291, 16
      %v677 = vrot.slane %v675, 4
      %v678 = vshll.u32 %v291, 16
      %v680 = vrot.slane %v678, 5
      %v681 = vor.u32 %v677, %v680
      %v682 = vrot.slane %v681, 4
      %v684 = vshll.u32 %v292, 16
      %v686 = vrot.slane %v684, 5
      %v687 = vsel %vm625, %v682, %v686
      %v688 = vshrl.u32 %v292, 16
      %v690 = vrot.slane %v688, 4
      %v691 = vor.u32 %v690, %v686
      %v692 = vrot.slane %v691, 4
      %v694 = vshll.u32 %v293, 16
      %v696 = vrot.slane %v694, 5
      %v697 = vsel %vm625, %v692, %v696
      %v699 = vshrl.u32 %v294, 16
      %v701 = vrot.slane %v699, 4
      %v702 = vshll.u32 %v294, 16
      %v704 = vrot.slane %v702, 5
      %v705 = vor.u32 %v701, %v704
      %v706 = vrot.slane %v705, 4
      %v708 = vshll.u32 %v295, 16
      %v710 = vrot.slane %v708, 5
      %v711 = vsel %vm625, %v706, %v710
      %v712 = vshrl.u32 %v295, 16
      %v714 = vrot.slane %v712, 4
      %v715 = vor.u32 %v714, %v710
      %v716 = vrot.slane %v715, 4
      %v718 = vshll.u32 %v296, 16
      %v720 = vrot.slane %v718, 5
      %v721 = vsel %vm625, %v716, %v720
      %v723 = vshrl.u32 %v297, 16
      %v725 = vrot.slane %v723, 4
      %v726 = vshll.u32 %v297, 16
      %v728 = vrot.slane %v726, 5
      %v729 = vor.u32 %v725, %v728
      %v730 = vrot.slane %v729, 4
      %v732 = vshll.u32 %v298, 16
      %v734 = vrot.slane %v732, 5
      %v735 = vsel %vm625, %v730, %v734
      %v736 = vshrl.u32 %v298, 16
      %v738 = vrot.slane %v736, 4
      %v739 = vor.u32 %v738, %v734
      %v740 = vrot.slane %v739, 4
      %v742 = vshll.u32 %v299, 16
      %v744 = vrot.slane %v742, 5
      %v745 = vsel %vm625, %v740, %v744
      %v747 = vshrl.u32 %v300, 16
      %v749 = vrot.slane %v747, 4
      %v750 = vshll.u32 %v300, 16
      %v752 = vrot.slane %v750, 5
      %v753 = vor.u32 %v749, %v752
      %v754 = vrot.slane %v753, 4
      %v756 = vshll.u32 %v301, 16
      %v758 = vrot.slane %v756, 5
      %v759 = vsel %vm625, %v754, %v758
      %v760 = vshrl.u32 %v301, 16
      %v762 = vrot.slane %v760, 4
      %v763 = vor.u32 %v762, %v758
      %v764 = vrot.slane %v763, 4
      %v766 = vshll.u32 %v302, 16
      %v768 = vrot.slane %v766, 5
      %v769 = vsel %vm625, %v764, %v768
      %v771 = vshrl.u32 %v303, 16
      %v773 = vrot.slane %v771, 4
      %v774 = vshll.u32 %v303, 16
      %v776 = vrot.slane %v774, 5
      %v777 = vor.u32 %v773, %v776
      %v778 = vrot.slane %v777, 4
      %v780 = vshll.u32 %v304, 16
      %v782 = vrot.slane %v780, 5
      %v783 = vsel %vm625, %v778, %v782
      %v784 = vshrl.u32 %v304, 16
      %v786 = vrot.slane %v784, 4
      %v787 = vor.u32 %v786, %v782
      %v788 = vrot.slane %v787, 4
      %v790 = vshll.u32 %v305, 16
      %v792 = vrot.slane %v790, 5
      %v793 = vsel %vm625, %v788, %v792
      %v795 = vshrl.u32 %v306, 16
      %v797 = vrot.slane %v795, 4
      %v798 = vshll.u32 %v306, 16
      %v800 = vrot.slane %v798, 5
      %v801 = vor.u32 %v797, %v800
      %v802 = vrot.slane %v801, 4
      %v804 = vshll.u32 %v307, 16
      %v806 = vrot.slane %v804, 5
      %v807 = vsel %vm625, %v802, %v806
      %v808 = vshrl.u32 %v307, 16
      %v810 = vrot.slane %v808, 4
      %v811 = vor.u32 %v810, %v806
      %v812 = vrot.slane %v811, 4
      %v814 = vshll.u32 %v308, 16
      %v816 = vrot.slane %v814, 5
      %v817 = vsel %vm625, %v812, %v816
      %v819 = vshrl.u32 %v309, 16
      %v821 = vrot.slane %v819, 4
      %v822 = vshll.u32 %v309, 16
      %v824 = vrot.slane %v822, 5
      %v825 = vor.u32 %v821, %v824
      %v826 = vrot.slane %v825, 4
      %v828 = vshll.u32 %v310, 16
      %v830 = vrot.slane %v828, 5
      %v831 = vsel %vm625, %v826, %v830
      %v832 = vshrl.u32 %v310, 16
      %v834 = vrot.slane %v832, 4
      %v835 = vor.u32 %v834, %v830
      %v836 = vrot.slane %v835, 4
      %v838 = vshll.u32 %v311, 16
      %v840 = vrot.slane %v838, 5
      %v841 = vsel %vm625, %v836, %v840
      %v843 = vshrl.u32 %v312, 16
      %v845 = vrot.slane %v843, 4
      %v846 = vshll.u32 %v312, 16
      %v848 = vrot.slane %v846, 5
      %v849 = vor.u32 %v845, %v848
      %v850 = vrot.slane %v849, 4
      %v852 = vshll.u32 %v313, 16
      %v854 = vrot.slane %v852, 5
      %v855 = vsel %vm625, %v850, %v854
      %v856 = vshrl.u32 %v313, 16
      %v858 = vrot.slane %v856, 4
      %v859 = vor.u32 %v858, %v854
      %v860 = vrot.slane %v859, 4
      %v862 = vshll.u32 %v314, 16
      %v864 = vrot.slane %v862, 5
      %v865 = vsel %vm625, %v860, %v864
      %v867 = vshrl.u32 %v315, 16
      %v869 = vrot.slane %v867, 4
      %v870 = vshll.u32 %v315, 16
      %v872 = vrot.slane %v870, 5
      %v873 = vor.u32 %v869, %v872
      %v874 = vrot.slane %v873, 4
      %v876 = vshll.u32 %v316, 16
      %v878 = vrot.slane %v876, 5
      %v879 = vsel %vm625, %v874, %v878
      %v880 = vshrl.u32 %v316, 16
      %v882 = vrot.slane %v880, 4
      %v883 = vor.u32 %v882, %v878
      %v884 = vrot.slane %v883, 4
      %v886 = vshll.u32 %v317, 16
      %v888 = vrot.slane %v886, 5
      %v889 = vsel %vm625, %v884, %v888
      %v891 = vshrl.u32 %v318, 16
      %v893 = vrot.slane %v891, 4
      %v894 = vshll.u32 %v318, 16
      %v896 = vrot.slane %v894, 5
      %v897 = vor.u32 %v893, %v896
      %v898 = vrot.slane %v897, 4
      %v900 = vshll.u32 %v319, 16
      %v902 = vrot.slane %v900, 5
      %v903 = vsel %vm625, %v898, %v902
      %v904 = vshrl.u32 %v319, 16
      %v906 = vrot.slane %v904, 4
      %v907 = vor.u32 %v906, %v902
      %v908 = vrot.slane %v907, 4
      %v910 = vshll.u32 %v320, 16
      %v912 = vrot.slane %v910, 5
      %v913 = vsel %vm625, %v908, %v912
      %v915 = vshrl.u32 %v321, 16
      %v917 = vrot.slane %v915, 4
      %v918 = vshll.u32 %v321, 16
      %v920 = vrot.slane %v918, 5
      %v921 = vor.u32 %v917, %v920
      %v922 = vrot.slane %v921, 4
      %v924 = vshll.u32 %v322, 16
      %v926 = vrot.slane %v924, 5
      %v927 = vsel %vm625, %v922, %v926
      %v928 = vshrl.u32 %v322, 16
      %v930 = vrot.slane %v928, 4
      %v931 = vor.u32 %v930, %v926
      %v932 = vrot.slane %v931, 4
      %v934 = vshll.u32 %v323, 16
      %v936 = vrot.slane %v934, 5
      %v937 = vsel %vm625, %v932, %v936
      %v939 = vshrl.u32 %v324, 16
      %v941 = vrot.slane %v939, 4
      %v942 = vshll.u32 %v324, 16
      %v944 = vrot.slane %v942, 5
      %v945 = vor.u32 %v941, %v944
      %v946 = vrot.slane %v945, 4
      %v948 = vshll.u32 %v325, 16
      %v950 = vrot.slane %v948, 5
      %v951 = vsel %vm625, %v946, %v950
      %v952 = vshrl.u32 %v325, 16
      %v954 = vrot.slane %v952, 4
      %v955 = vor.u32 %v954, %v950
      %v956 = vrot.slane %v955, 4
      %v958 = vshll.u32 %v326, 16
      %v960 = vrot.slane %v958, 5
      %v961 = vsel %vm625, %v956, %v960
      %v963 = vshrl.u32 %v327, 16
      %v965 = vrot.slane %v963, 4
      %v966 = vshll.u32 %v327, 16
      %v968 = vrot.slane %v966, 5
      %v969 = vor.u32 %v965, %v968
      %v970 = vrot.slane %v969, 4
      %v972 = vshll.u32 %v328, 16
      %v974 = vrot.slane %v972, 5
      %v975 = vsel %vm625, %v970, %v974
      %v976 = vshrl.u32 %v328, 16
      %v978 = vrot.slane %v976, 4
      %v979 = vor.u32 %v978, %v974
      %v980 = vrot.slane %v979, 4
      %v982 = vshll.u32 %v329, 16
      %v984 = vrot.slane %v982, 5
      %v985 = vsel %vm625, %v980, %v984
      %v987 = vshrl.u32 %v330, 16
      %v989 = vrot.slane %v987, 4
      %v990 = vshll.u32 %v330, 16
      %v992 = vrot.slane %v990, 5
      %v993 = vor.u32 %v989, %v992
      %v994 = vrot.slane %v993, 4
      %v996 = vshll.u32 %v331, 16
      %v998 = vrot.slane %v996, 5
      %v999 = vsel %vm625, %v994, %v998
      %v1000 = vshrl.u32 %v331, 16
      %v1002 = vrot.slane %v1000, 4
      %v1003 = vor.u32 %v1002, %v998
      %v1004 = vrot.slane %v1003, 4
      %v1006 = vshll.u32 %v332, 16
      %v1008 = vrot.slane %v1006, 5
      %v1009 = vsel %vm625, %v1004, %v1008
      %s1010 = scalar_lea.vmem %s1, 36
      %v1011 = vld [vmem:[%s1010] sm:$0xf]
      %v1012 = vld [vmem:[%s1010 + $0x4] sm:$0xf]
      %v1013 = vld [vmem:[%s1010 + $0x8] sm:$0xf]
      %v1014 = vld [vmem:[%s1010 + $0xc] sm:$0xf]
      %v1015 = vld [vmem:[%s1010 + $0x10] sm:$0xf]
      %v1016 = vld [vmem:[%s1010 + $0x14] sm:$0xf]
      %v1017 = vld [vmem:[%s1010 + $0x18] sm:$0xf]
      %v1018 = vld [vmem:[%s1010 + $0x1c] sm:$0xf]
      %v1019 = vld [vmem:[%s1010 + $0x20] sm:$0xf]
      %v1020 = vunpack.c.l.b16 %v639
      %v1021 = vunpack.c.l.b16 %v649
      %v1022 = vunpack.c.l.b16 %v663
      %v1023 = vunpack.c.l.b16 %v673
      %v1024 = vunpack.c.l.b16 %v687
      %v1025 = vunpack.c.l.b16 %v697
      %v1026 = vunpack.c.l.b16 %v711
      %v1027 = vunpack.c.l.b16 %v721
      %v1028 = vunpack.c.l.b16 %v735
      %v1029 = vunpack.c.l.b16 %v745
      %v1030 = vunpack.c.l.b16 %v759
      %v1031 = vunpack.c.l.b16 %v769
      %v1032 = vunpack.c.l.b16 %v783
      %v1033 = vunpack.c.l.b16 %v793
      %v1034 = vunpack.c.l.b16 %v807
      %v1035 = vunpack.c.l.b16 %v817
      %v1036 = vunpack.c.l.b16 %v831
      %v1037 = vunpack.c.l.b16 %v841
      %v1038 = vunpack.c.l.b16 %v855
      %v1039 = vunpack.c.l.b16 %v865
      %v1040 = vunpack.c.l.b16 %v879
      %v1041 = vunpack.c.l.b16 %v889
      %v1042 = vunpack.c.l.b16 %v903
      %v1043 = vunpack.c.l.b16 %v913
      %v1044 = vunpack.c.l.b16 %v927
      %v1045 = vunpack.c.l.b16 %v937
      %v1046 = vunpack.c.l.b16 %v951
      %v1047 = vunpack.c.l.b16 %v961
      %v1048 = vunpack.c.l.b16 %v975
      %v1049 = vunpack.c.l.b16 %v985
      %v1050 = vunpack.c.l.b16 %v999
      %v1051 = vunpack.c.l.b16 %v1009
      %v1052 = vpack.c.b16 %v1021, %v1020
      %v1053 = vpack.c.b16 %v1023, %v1022
      %v1054 = vpack.c.b16 %v1025, %v1024
      %v1055 = vpack.c.b16 %v1027, %v1026
      %v1056 = vpack.c.b16 %v1029, %v1028
      %v1057 = vpack.c.b16 %v1031, %v1030
      %v1058 = vpack.c.b16 %v1033, %v1032
      %v1059 = vpack.c.b16 %v1035, %v1034
      %v1060 = vpack.c.b16 %v1037, %v1036
      %v1061 = vpack.c.b16 %v1039, %v1038
      %v1062 = vpack.c.b16 %v1041, %v1040
      %v1063 = vpack.c.b16 %v1043, %v1042
      %v1064 = vpack.c.b16 %v1045, %v1044
      %v1065 = vpack.c.b16 %v1047, %v1046
      %v1066 = vpack.c.b16 %v1049, %v1048
      %v1067 = vpack.c.b16 %v1051, %v1050
      %v1077 = vunpack.c.l.b16 %v1011
      %v1078 = vunpack.c.l.b16 %v1012
      %v1079 = vunpack.c.l.b16 %v1013
      %v1080 = vunpack.c.l.b16 %v1014
      %v1081 = vunpack.c.l.b16 %v1015
      %v1082 = vunpack.c.l.b16 %v1016
      %v1083 = vunpack.c.l.b16 %v1017
      %v1084 = vunpack.c.l.b16 %v1018
      %v1085 = vunpack.c.l.b16 %v1019
      %v1086 = vpack.c.b16 %v1078, %v1077
      %v1087 = vpack.c.b16 %v1080, %v1079
      %v1088 = vpack.c.b16 %v1082, %v1081
      %v1089 = vpack.c.b16 %v1084, %v1083
      %v1090 = vpack.c.b16 %v1085, %v1085
      %v1096 = vsel %vm449, %v1052, 0
      %v1099 = vsel %vm449, %v1053, 0
      %v1102 = vsel %vm449, %v1054, 0
      %v1105 = vsel %vm449, %v1055, 0
      %v1108 = vsel %vm449, %v1056, 0
      %v1111 = vsel %vm449, %v1057, 0
      %v1114 = vsel %vm449, %v1058, 0
      %v1117 = vsel %vm449, %v1059, 0
      %v1120 = vsel %vm449, %v1060, 0
      %v1123 = vsel %vm449, %v1061, 0
      %v1126 = vsel %vm449, %v1062, 0
      %v1129 = vsel %vm449, %v1063, 0
      %v1132 = vsel %vm449, %v1064, 0
      %v1135 = vsel %vm449, %v1065, 0
      %v1138 = vsel %vm449, %v1066, 0
      %v1141 = vsel %vm449, %v1067, 0
      %v1144 = vsel %vm498, %v1090, 0
      %1146 = vmatpush.bf16.msra.mxu0 0
      %1147 = vmatpush.bf16.msra.mxu0 0
      %1148 = vmatpush.bf16.msra.mxu0 0
      %1149 = vmatpush.bf16.msra.mxu0 %v1144
      %1150 = vmatpush.bf16.msra.mxu0 %v1089
      %1151 = vmatpush.bf16.msra.mxu0 %v1088
      %1152 = vmatpush.bf16.msra.mxu0 %v1087
      %1153 = vmatpush.bf16.msra.mxu0 %v1086
      %1154 = vmatmul.bf16.gmra.mxu0 %v1096
      %v1155 = vpop.f32.mrf.mxu0
      %v1156 = vadd.f32 0.0, %v1155
      %v1157 = vpop.f32.mrf.mxu0
      %v1158 = vadd.f32 0.0, %v1157
      %1159 = vmatmul.bf16.gmra.mxu0 %v1099
      %v1160 = vpop.f32.mrf.mxu0
      %v1161 = vadd.f32 0.0, %v1160
      %v1162 = vpop.f32.mrf.mxu0
      %v1163 = vadd.f32 0.0, %v1162
      %1164 = vmatmul.bf16.gmra.mxu0 %v1102
      %v1165 = vpop.f32.mrf.mxu0
      %v1166 = vadd.f32 0.0, %v1165
      %v1167 = vpop.f32.mrf.mxu0
      %v1168 = vadd.f32 0.0, %v1167
      %1169 = vmatmul.bf16.gmra.mxu0 %v1105
      %v1170 = vpop.f32.mrf.mxu0
      %v1171 = vadd.f32 0.0, %v1170
      %v1172 = vpop.f32.mrf.mxu0
      %v1173 = vadd.f32 0.0, %v1172
      %1174 = vmatmul.bf16.gmra.mxu0 %v1108
      %v1175 = vpop.f32.mrf.mxu0
      %v1176 = vadd.f32 0.0, %v1175
      %v1177 = vpop.f32.mrf.mxu0
      %v1178 = vadd.f32 0.0, %v1177
      %1179 = vmatmul.bf16.gmra.mxu0 %v1111
      %v1180 = vpop.f32.mrf.mxu0
      %v1181 = vadd.f32 0.0, %v1180
      %v1182 = vpop.f32.mrf.mxu0
      %v1183 = vadd.f32 0.0, %v1182
      %1184 = vmatmul.bf16.gmra.mxu0 %v1114
      %v1185 = vpop.f32.mrf.mxu0
      %v1186 = vadd.f32 0.0, %v1185
      %v1187 = vpop.f32.mrf.mxu0
      %v1188 = vadd.f32 0.0, %v1187
      %1189 = vmatmul.bf16.gmra.mxu0 %v1117
      %v1190 = vpop.f32.mrf.mxu0
      %v1191 = vadd.f32 0.0, %v1190
      %v1192 = vpop.f32.mrf.mxu0
      %v1193 = vadd.f32 0.0, %v1192
      %1194 = vmatmul.bf16.gmra.mxu0 %v1120
      %v1195 = vpop.f32.mrf.mxu0
      %v1196 = vadd.f32 0.0, %v1195
      %v1197 = vpop.f32.mrf.mxu0
      %v1198 = vadd.f32 0.0, %v1197
      %1199 = vmatmul.bf16.gmra.mxu0 %v1123
      %v1200 = vpop.f32.mrf.mxu0
      %v1201 = vadd.f32 0.0, %v1200
      %v1202 = vpop.f32.mrf.mxu0
      %v1203 = vadd.f32 0.0, %v1202
      %1204 = vmatmul.bf16.gmra.mxu0 %v1126
      %v1205 = vpop.f32.mrf.mxu0
      %v1206 = vadd.f32 0.0, %v1205
      %v1207 = vpop.f32.mrf.mxu0
      %v1208 = vadd.f32 0.0, %v1207
      %1209 = vmatmul.bf16.gmra.mxu0 %v1129
      %v1210 = vpop.f32.mrf.mxu0
      %v1211 = vadd.f32 0.0, %v1210
      %v1212 = vpop.f32.mrf.mxu0
      %v1213 = vadd.f32 0.0, %v1212
      %1214 = vmatmul.bf16.gmra.mxu0 %v1132
      %v1215 = vpop.f32.mrf.mxu0
      %v1216 = vadd.f32 0.0, %v1215
      %v1217 = vpop.f32.mrf.mxu0
      %v1218 = vadd.f32 0.0, %v1217
      %1219 = vmatmul.bf16.gmra.mxu0 %v1135
      %v1220 = vpop.f32.mrf.mxu0
      %v1221 = vadd.f32 0.0, %v1220
      %v1222 = vpop.f32.mrf.mxu0
      %v1223 = vadd.f32 0.0, %v1222
      %1224 = vmatmul.bf16.gmra.mxu0 %v1138
      %v1225 = vpop.f32.mrf.mxu0
      %v1226 = vadd.f32 0.0, %v1225
      %v1227 = vpop.f32.mrf.mxu0
      %v1228 = vadd.f32 0.0, %v1227
      %1229 = vmatmul.bf16.gmra.mxu0 %v1141
      %v1230 = vpop.f32.mrf.mxu0
      %v1231 = vadd.f32 0.0, %v1230
      %v1232 = vpop.f32.mrf.mxu0
      %v1233 = vadd.f32 0.0, %v1232
      %1234 = vdwg.mxu0
      %v1235 = vld [vmem:[#allocation2] sm:$0xff]
      %v1236 = vld [vmem:[#allocation2 + $0x8] sm:$0xff]
      %v1237 = vld [vmem:[#allocation2 + $0x10] sm:$0xff]
      %v1238 = vld [vmem:[#allocation2 + $0x18] sm:$0xff]
      %v1239 = vld [vmem:[#allocation2 + $0x20] sm:$0xff]
      %v1240 = vld [vmem:[#allocation2 + $0x28] sm:$0xff]
      %v1241 = vld [vmem:[#allocation2 + $0x30] sm:$0xff]
      %v1242 = vld [vmem:[#allocation2 + $0x38] sm:$0xff]
      %v1243 = vld [vmem:[#allocation2 + $0x40] sm:$0xff]
      %v1244 = vld [vmem:[#allocation2 + $0x48] sm:$0xff]
      %v1245 = vld [vmem:[#allocation2 + $0x50] sm:$0xff]
      %v1246 = vld [vmem:[#allocation2 + $0x58] sm:$0xff]
      %v1247 = vld [vmem:[#allocation2 + $0x60] sm:$0xff]
      %v1248 = vld [vmem:[#allocation2 + $0x68] sm:$0xff]
      %v1249 = vld [vmem:[#allocation2 + $0x70] sm:$0xff]
      %v1250 = vld [vmem:[#allocation2 + $0x78] sm:$0xff]
      %v1251 = vld [vmem:[#allocation2 + $0x80] sm:$0xff]
      %v1252 = vld [vmem:[#allocation2 + $0x88] sm:$0xff]
      %v1253 = vld [vmem:[#allocation2 + $0x90] sm:$0xff]
      %v1254 = vld [vmem:[#allocation2 + $0x98] sm:$0xff]
      %v1255 = vld [vmem:[#allocation2 + $0xa0] sm:$0xff]
      %v1256 = vld [vmem:[#allocation2 + $0xa8] sm:$0xff]
      %v1257 = vld [vmem:[#allocation2 + $0xb0] sm:$0xff]
      %v1258 = vld [vmem:[#allocation2 + $0xb8] sm:$0xff]
      %v1259 = vld [vmem:[#allocation2 + $0xc0] sm:$0xff]
      %v1260 = vld [vmem:[#allocation2 + $0xc8] sm:$0xff]
      %v1261 = vld [vmem:[#allocation2 + $0xd0] sm:$0xff]
      %v1262 = vld [vmem:[#allocation2 + $0xd8] sm:$0xff]
      %v1263 = vld [vmem:[#allocation2 + $0xe0] sm:$0xff]
      %v1264 = vld [vmem:[#allocation2 + $0xe8] sm:$0xff]
      %v1265 = vld [vmem:[#allocation2 + $0xf0] sm:$0xff]
      %v1266 = vld [vmem:[#allocation2 + $0xf8] sm:$0xff]
      %v1267 = vadd.f32 %v1235, %v1156
      %v1268 = vadd.f32 %v1236, %v1158
      %v1269 = vadd.f32 %v1237, %v1161
      %v1270 = vadd.f32 %v1238, %v1163
      %v1271 = vadd.f32 %v1239, %v1166
      %v1272 = vadd.f32 %v1240, %v1168
      %v1273 = vadd.f32 %v1241, %v1171
      %v1274 = vadd.f32 %v1242, %v1173
      %v1275 = vadd.f32 %v1243, %v1176
      %v1276 = vadd.f32 %v1244, %v1178
      %v1277 = vadd.f32 %v1245, %v1181
      %v1278 = vadd.f32 %v1246, %v1183
      %v1279 = vadd.f32 %v1247, %v1186
      %v1280 = vadd.f32 %v1248, %v1188
      %v1281 = vadd.f32 %v1249, %v1191
      %v1282 = vadd.f32 %v1250, %v1193
      %v1283 = vadd.f32 %v1251, %v1196
      %v1284 = vadd.f32 %v1252, %v1198
      %v1285 = vadd.f32 %v1253, %v1201
      %v1286 = vadd.f32 %v1254, %v1203
      %v1287 = vadd.f32 %v1255, %v1206
      %v1288 = vadd.f32 %v1256, %v1208
      %v1289 = vadd.f32 %v1257, %v1211
      %v1290 = vadd.f32 %v1258, %v1213
      %v1291 = vadd.f32 %v1259, %v1216
      %v1292 = vadd.f32 %v1260, %v1218
      %v1293 = vadd.f32 %v1261, %v1221
      %v1294 = vadd.f32 %v1262, %v1223
      %v1295 = vadd.f32 %v1263, %v1226
      %v1296 = vadd.f32 %v1264, %v1228
      %v1297 = vadd.f32 %v1265, %v1231
      %v1298 = vadd.f32 %v1266, %v1233
      %1299 = vst [vmem:[#allocation2] sm:$0xff] %v1267
      %1300 = vst [vmem:[#allocation2 + $0x8] sm:$0xff] %v1268
      %1301 = vst [vmem:[#allocation2 + $0x10] sm:$0xff] %v1269
      %1302 = vst [vmem:[#allocation2 + $0x18] sm:$0xff] %v1270
      %1303 = vst [vmem:[#allocation2 + $0x20] sm:$0xff] %v1271
      %1304 = vst [vmem:[#allocation2 + $0x28] sm:$0xff] %v1272
      %1305 = vst [vmem:[#allocation2 + $0x30] sm:$0xff] %v1273
      %1306 = vst [vmem:[#allocation2 + $0x38] sm:$0xff] %v1274
      %1307 = vst [vmem:[#allocation2 + $0x40] sm:$0xff] %v1275
      %1308 = vst [vmem:[#allocation2 + $0x48] sm:$0xff] %v1276
      %1309 = vst [vmem:[#allocation2 + $0x50] sm:$0xff] %v1277
      %1310 = vst [vmem:[#allocation2 + $0x58] sm:$0xff] %v1278
      %1311 = vst [vmem:[#allocation2 + $0x60] sm:$0xff] %v1279
      %1312 = vst [vmem:[#allocation2 + $0x68] sm:$0xff] %v1280
      %1313 = vst [vmem:[#allocation2 + $0x70] sm:$0xff] %v1281
      %1314 = vst [vmem:[#allocation2 + $0x78] sm:$0xff] %v1282
      %1315 = vst [vmem:[#allocation2 + $0x80] sm:$0xff] %v1283
      %1316 = vst [vmem:[#allocation2 + $0x88] sm:$0xff] %v1284
      %1317 = vst [vmem:[#allocation2 + $0x90] sm:$0xff] %v1285
      %1318 = vst [vmem:[#allocation2 + $0x98] sm:$0xff] %v1286
      %1319 = vst [vmem:[#allocation2 + $0xa0] sm:$0xff] %v1287
      %1320 = vst [vmem:[#allocation2 + $0xa8] sm:$0xff] %v1288
      %1321 = vst [vmem:[#allocation2 + $0xb0] sm:$0xff] %v1289
      %1322 = vst [vmem:[#allocation2 + $0xb8] sm:$0xff] %v1290
      %1323 = vst [vmem:[#allocation2 + $0xc0] sm:$0xff] %v1291
      %1324 = vst [vmem:[#allocation2 + $0xc8] sm:$0xff] %v1292
      %1325 = vst [vmem:[#allocation2 + $0xd0] sm:$0xff] %v1293
      %1326 = vst [vmem:[#allocation2 + $0xd8] sm:$0xff] %v1294
      %1327 = vst [vmem:[#allocation2 + $0xe0] sm:$0xff] %v1295
      %1328 = vst [vmem:[#allocation2 + $0xe8] sm:$0xff] %v1296
      %1329 = vst [vmem:[#allocation2 + $0xf0] sm:$0xff] %v1297
      %1330 = vst [vmem:[#allocation2 + $0xf8] sm:$0xff] %v1298
      %vm1347 = vcmask 1042432
      %vm1348 = vcmask 1046532
      %vm1349 = vmor %vm1347, %vm1348
      %v1350 = vrot.slane %v285, 5
      %v1351 = vrot.slane %v1350, 4
      %v1352 = vrot.slane %v286, 5
      %v1353 = vsel %vm1349, %v1351, %v1352
      %v1354 = vrot.slane %v1352, 4
      %v1355 = vrot.slane %v287, 5
      %v1356 = vsel %vm1349, %v1354, %v1355
      %v1357 = vrot.slane %v288, 5
      %v1358 = vrot.slane %v1357, 4
      %v1359 = vrot.slane %v289, 5
      %v1360 = vsel %vm1349, %v1358, %v1359
      %v1361 = vrot.slane %v1359, 4
      %v1362 = vrot.slane %v290, 5
      %v1363 = vsel %vm1349, %v1361, %v1362
      %v1364 = vrot.slane %v291, 5
      %v1365 = vrot.slane %v1364, 4
      %v1366 = vrot.slane %v292, 5
      %v1367 = vsel %vm1349, %v1365, %v1366
      %v1368 = vrot.slane %v1366, 4
      %v1369 = vrot.slane %v293, 5
      %v1370 = vsel %vm1349, %v1368, %v1369
      %v1371 = vrot.slane %v294, 5
      %v1372 = vrot.slane %v1371, 4
      %v1373 = vrot.slane %v295, 5
      %v1374 = vsel %vm1349, %v1372, %v1373
      %v1375 = vrot.slane %v1373, 4
      %v1376 = vrot.slane %v296, 5
      %v1377 = vsel %vm1349, %v1375, %v1376
      %v1378 = vrot.slane %v297, 5
      %v1379 = vrot.slane %v1378, 4
      %v1380 = vrot.slane %v298, 5
      %v1381 = vsel %vm1349, %v1379, %v1380
      %v1382 = vrot.slane %v1380, 4
      %v1383 = vrot.slane %v299, 5
      %v1384 = vsel %vm1349, %v1382, %v1383
      %v1385 = vrot.slane %v300, 5
      %v1386 = vrot.slane %v1385, 4
      %v1387 = vrot.slane %v301, 5
      %v1388 = vsel %vm1349, %v1386, %v1387
      %v1389 = vrot.slane %v1387, 4
      %v1390 = vrot.slane %v302, 5
      %v1391 = vsel %vm1349, %v1389, %v1390
      %v1392 = vrot.slane %v303, 5
      %v1393 = vrot.slane %v1392, 4
      %v1394 = vrot.slane %v304, 5
      %v1395 = vsel %vm1349, %v1393, %v1394
      %v1396 = vrot.slane %v1394, 4
      %v1397 = vrot.slane %v305, 5
      %v1398 = vsel %vm1349, %v1396, %v1397
      %v1399 = vrot.slane %v306, 5
      %v1400 = vrot.slane %v1399, 4
      %v1401 = vrot.slane %v307, 5
      %v1402 = vsel %vm1349, %v1400, %v1401
      %v1403 = vrot.slane %v1401, 4
      %v1404 = vrot.slane %v308, 5
      %v1405 = vsel %vm1349, %v1403, %v1404
      %v1406 = vrot.slane %v309, 5
      %v1407 = vrot.slane %v1406, 4
      %v1408 = vrot.slane %v310, 5
      %v1409 = vsel %vm1349, %v1407, %v1408
      %v1410 = vrot.slane %v1408, 4
      %v1411 = vrot.slane %v311, 5
      %v1412 = vsel %vm1349, %v1410, %v1411
      %v1413 = vrot.slane %v312, 5
      %v1414 = vrot.slane %v1413, 4
      %v1415 = vrot.slane %v313, 5
      %v1416 = vsel %vm1349, %v1414, %v1415
      %v1417 = vrot.slane %v1415, 4
      %v1418 = vrot.slane %v314, 5
      %v1419 = vsel %vm1349, %v1417, %v1418
      %v1420 = vrot.slane %v315, 5
      %v1421 = vrot.slane %v1420, 4
      %v1422 = vrot.slane %v316, 5
      %v1423 = vsel %vm1349, %v1421, %v1422
      %v1424 = vrot.slane %v1422, 4
      %v1425 = vrot.slane %v317, 5
      %v1426 = vsel %vm1349, %v1424, %v1425
      %v1427 = vrot.slane %v318, 5
      %v1428 = vrot.slane %v1427, 4
      %v1429 = vrot.slane %v319, 5
      %v1430 = vsel %vm1349, %v1428, %v1429
      %v1431 = vrot.slane %v1429, 4
      %v1432 = vrot.slane %v320, 5
      %v1433 = vsel %vm1349, %v1431, %v1432
      %v1434 = vrot.slane %v321, 5
      %v1435 = vrot.slane %v1434, 4
      %v1436 = vrot.slane %v322, 5
      %v1437 = vsel %vm1349, %v1435, %v1436
      %v1438 = vrot.slane %v1436, 4
      %v1439 = vrot.slane %v323, 5
      %v1440 = vsel %vm1349, %v1438, %v1439
      %v1441 = vrot.slane %v324, 5
      %v1442 = vrot.slane %v1441, 4
      %v1443 = vrot.slane %v325, 5
      %v1444 = vsel %vm1349, %v1442, %v1443
      %v1445 = vrot.slane %v1443, 4
      %v1446 = vrot.slane %v326, 5
      %v1447 = vsel %vm1349, %v1445, %v1446
      %v1448 = vrot.slane %v327, 5
      %v1449 = vrot.slane %v1448, 4
      %v1450 = vrot.slane %v328, 5
      %v1451 = vsel %vm1349, %v1449, %v1450
      %v1452 = vrot.slane %v1450, 4
      %v1453 = vrot.slane %v329, 5
      %v1454 = vsel %vm1349, %v1452, %v1453
      %v1455 = vrot.slane %v330, 5
      %v1456 = vrot.slane %v1455, 4
      %v1457 = vrot.slane %v331, 5
      %v1458 = vsel %vm1349, %v1456, %v1457
      %v1459 = vrot.slane %v1457, 4
      %v1460 = vrot.slane %v332, 5
      %v1461 = vsel %vm1349, %v1459, %v1460
      %s1462 = scalar_lea.vmem %s1, 72
      %v1463 = vld [vmem:[%s1462] sm:$0xf]
      %v1464 = vld [vmem:[%s1462 + $0x4] sm:$0xf]
      %v1465 = vld [vmem:[%s1462 + $0x8] sm:$0xf]
      %v1466 = vld [vmem:[%s1462 + $0xc] sm:$0xf]
      %v1467 = vld [vmem:[%s1462 + $0x10] sm:$0xf]
      %v1468 = vld [vmem:[%s1462 + $0x14] sm:$0xf]
      %v1469 = vld [vmem:[%s1462 + $0x18] sm:$0xf]
      %v1470 = vld [vmem:[%s1462 + $0x1c] sm:$0xf]
      %v1471 = vld [vmem:[%s1462 + $0x20] sm:$0xf]
      %v1472 = vunpack.c.l.b16 %v1353
      %v1473 = vunpack.c.l.b16 %v1356
      %v1474 = vunpack.c.l.b16 %v1360
      %v1475 = vunpack.c.l.b16 %v1363
      %v1476 = vunpack.c.l.b16 %v1367
      %v1477 = vunpack.c.l.b16 %v1370
      %v1478 = vunpack.c.l.b16 %v1374
      %v1479 = vunpack.c.l.b16 %v1377
      %v1480 = vunpack.c.l.b16 %v1381
      %v1481 = vunpack.c.l.b16 %v1384
      %v1482 = vunpack.c.l.b16 %v1388
      %v1483 = vunpack.c.l.b16 %v1391
      %v1484 = vunpack.c.l.b16 %v1395
      %v1485 = vunpack.c.l.b16 %v1398
      %v1486 = vunpack.c.l.b16 %v1402
      %v1487 = vunpack.c.l.b16 %v1405
      %v1488 = vunpack.c.l.b16 %v1409
      %v1489 = vunpack.c.l.b16 %v1412
      %v1490 = vunpack.c.l.b16 %v1416
      %v1491 = vunpack.c.l.b16 %v1419
      %v1492 = vunpack.c.l.b16 %v1423
      %v1493 = vunpack.c.l.b16 %v1426
      %v1494 = vunpack.c.l.b16 %v1430
      %v1495 = vunpack.c.l.b16 %v1433
      %v1496 = vunpack.c.l.b16 %v1437
      %v1497 = vunpack.c.l.b16 %v1440
      %v1498 = vunpack.c.l.b16 %v1444
      %v1499 = vunpack.c.l.b16 %v1447
      %v1500 = vunpack.c.l.b16 %v1451
      %v1501 = vunpack.c.l.b16 %v1454
      %v1502 = vunpack.c.l.b16 %v1458
      %v1503 = vunpack.c.l.b16 %v1461
      %v1504 = vpack.c.b16 %v1473, %v1472
      %v1505 = vpack.c.b16 %v1475, %v1474
      %v1506 = vpack.c.b16 %v1477, %v1476
      %v1507 = vpack.c.b16 %v1479, %v1478
      %v1508 = vpack.c.b16 %v1481, %v1480
      %v1509 = vpack.c.b16 %v1483, %v1482
      %v1510 = vpack.c.b16 %v1485, %v1484
      %v1511 = vpack.c.b16 %v1487, %v1486
      %v1512 = vpack.c.b16 %v1489, %v1488
      %v1513 = vpack.c.b16 %v1491, %v1490
      %v1514 = vpack.c.b16 %v1493, %v1492
      %v1515 = vpack.c.b16 %v1495, %v1494
      %v1516 = vpack.c.b16 %v1497, %v1496
      %v1517 = vpack.c.b16 %v1499, %v1498
      %v1518 = vpack.c.b16 %v1501, %v1500
      %v1519 = vpack.c.b16 %v1503, %v1502
      %v1529 = vunpack.c.l.b16 %v1463
      %v1530 = vunpack.c.l.b16 %v1464
      %v1531 = vunpack.c.l.b16 %v1465
      %v1532 = vunpack.c.l.b16 %v1466
      %v1533 = vunpack.c.l.b16 %v1467
      %v1534 = vunpack.c.l.b16 %v1468
      %v1535 = vunpack.c.l.b16 %v1469
      %v1536 = vunpack.c.l.b16 %v1470
      %v1537 = vunpack.c.l.b16 %v1471
      %v1538 = vpack.c.b16 %v1530, %v1529
      %v1539 = vpack.c.b16 %v1532, %v1531
      %v1540 = vpack.c.b16 %v1534, %v1533
      %v1541 = vpack.c.b16 %v1536, %v1535
      %v1542 = vpack.c.b16 %v1537, %v1537
      %v1548 = vsel %vm449, %v1504, 0
      %v1551 = vsel %vm449, %v1505, 0
      %v1554 = vsel %vm449, %v1506, 0
      %v1557 = vsel %vm449, %v1507, 0
      %v1560 = vsel %vm449, %v1508, 0
      %v1563 = vsel %vm449, %v1509, 0
      %v1566 = vsel %vm449, %v1510, 0
      %v1569 = vsel %vm449, %v1511, 0
      %v1572 = vsel %vm449, %v1512, 0
      %v1575 = vsel %vm449, %v1513, 0
      %v1578 = vsel %vm449, %v1514, 0
      %v1581 = vsel %vm449, %v1515, 0
      %v1584 = vsel %vm449, %v1516, 0
      %v1587 = vsel %vm449, %v1517, 0
      %v1590 = vsel %vm449, %v1518, 0
      %v1593 = vsel %vm449, %v1519, 0
      %v1596 = vsel %vm498, %v1542, 0
      %1598 = vmatpush.bf16.msra.mxu0 0
      %1599 = vmatpush.bf16.msra.mxu0 0
      %1600 = vmatpush.bf16.msra.mxu0 0
      %1601 = vmatpush.bf16.msra.mxu0 %v1596
      %1602 = vmatpush.bf16.msra.mxu0 %v1541
      %1603 = vmatpush.bf16.msra.mxu0 %v1540
      %1604 = vmatpush.bf16.msra.mxu0 %v1539
      %1605 = vmatpush.bf16.msra.mxu0 %v1538
      %1606 = vmatmul.bf16.gmra.mxu0 %v1548
      %v1607 = vpop.f32.mrf.mxu0
      %v1608 = vadd.f32 0.0, %v1607
      %v1609 = vpop.f32.mrf.mxu0
      %v1610 = vadd.f32 0.0, %v1609
      %1611 = vmatmul.bf16.gmra.mxu0 %v1551
      %v1612 = vpop.f32.mrf.mxu0
      %v1613 = vadd.f32 0.0, %v1612
      %v1614 = vpop.f32.mrf.mxu0
      %v1615 = vadd.f32 0.0, %v1614
      %1616 = vmatmul.bf16.gmra.mxu0 %v1554
      %v1617 = vpop.f32.mrf.mxu0
      %v1618 = vadd.f32 0.0, %v1617
      %v1619 = vpop.f32.mrf.mxu0
      %v1620 = vadd.f32 0.0, %v1619
      %1621 = vmatmul.bf16.gmra.mxu0 %v1557
      %v1622 = vpop.f32.mrf.mxu0
      %v1623 = vadd.f32 0.0, %v1622
      %v1624 = vpop.f32.mrf.mxu0
      %v1625 = vadd.f32 0.0, %v1624
      %1626 = vmatmul.bf16.gmra.mxu0 %v1560
      %v1627 = vpop.f32.mrf.mxu0
      %v1628 = vadd.f32 0.0, %v1627
      %v1629 = vpop.f32.mrf.mxu0
      %v1630 = vadd.f32 0.0, %v1629
      %1631 = vmatmul.bf16.gmra.mxu0 %v1563
      %v1632 = vpop.f32.mrf.mxu0
      %v1633 = vadd.f32 0.0, %v1632
      %v1634 = vpop.f32.mrf.mxu0
      %v1635 = vadd.f32 0.0, %v1634
      %1636 = vmatmul.bf16.gmra.mxu0 %v1566
      %v1637 = vpop.f32.mrf.mxu0
      %v1638 = vadd.f32 0.0, %v1637
      %v1639 = vpop.f32.mrf.mxu0
      %v1640 = vadd.f32 0.0, %v1639
      %1641 = vmatmul.bf16.gmra.mxu0 %v1569
      %v1642 = vpop.f32.mrf.mxu0
      %v1643 = vadd.f32 0.0, %v1642
      %v1644 = vpop.f32.mrf.mxu0
      %v1645 = vadd.f32 0.0, %v1644
      %1646 = vmatmul.bf16.gmra.mxu0 %v1572
      %v1647 = vpop.f32.mrf.mxu0
      %v1648 = vadd.f32 0.0, %v1647
      %v1649 = vpop.f32.mrf.mxu0
      %v1650 = vadd.f32 0.0, %v1649
      %1651 = vmatmul.bf16.gmra.mxu0 %v1575
      %v1652 = vpop.f32.mrf.mxu0
      %v1653 = vadd.f32 0.0, %v1652
      %v1654 = vpop.f32.mrf.mxu0
      %v1655 = vadd.f32 0.0, %v1654
      %1656 = vmatmul.bf16.gmra.mxu0 %v1578
      %v1657 = vpop.f32.mrf.mxu0
      %v1658 = vadd.f32 0.0, %v1657
      %v1659 = vpop.f32.mrf.mxu0
      %v1660 = vadd.f32 0.0, %v1659
      %1661 = vmatmul.bf16.gmra.mxu0 %v1581
      %v1662 = vpop.f32.mrf.mxu0
      %v1663 = vadd.f32 0.0, %v1662
      %v1664 = vpop.f32.mrf.mxu0
      %v1665 = vadd.f32 0.0, %v1664
      %1666 = vmatmul.bf16.gmra.mxu0 %v1584
      %v1667 = vpop.f32.mrf.mxu0
      %v1668 = vadd.f32 0.0, %v1667
      %v1669 = vpop.f32.mrf.mxu0
      %v1670 = vadd.f32 0.0, %v1669
      %1671 = vmatmul.bf16.gmra.mxu0 %v1587
      %v1672 = vpop.f32.mrf.mxu0
      %v1673 = vadd.f32 0.0, %v1672
      %v1674 = vpop.f32.mrf.mxu0
      %v1675 = vadd.f32 0.0, %v1674
      %1676 = vmatmul.bf16.gmra.mxu0 %v1590
      %v1677 = vpop.f32.mrf.mxu0
      %v1678 = vadd.f32 0.0, %v1677
      %v1679 = vpop.f32.mrf.mxu0
      %v1680 = vadd.f32 0.0, %v1679
      %1681 = vmatmul.bf16.gmra.mxu0 %v1593
      %v1682 = vpop.f32.mrf.mxu0
      %v1683 = vadd.f32 0.0, %v1682
      %v1684 = vpop.f32.mrf.mxu0
      %v1685 = vadd.f32 0.0, %v1684
      %1686 = vdwg.mxu0
      %v1687 = vld [vmem:[#allocation2] sm:$0xff]
      %v1688 = vld [vmem:[#allocation2 + $0x8] sm:$0xff]
      %v1689 = vld [vmem:[#allocation2 + $0x10] sm:$0xff]
      %v1690 = vld [vmem:[#allocation2 + $0x18] sm:$0xff]
      %v1691 = vld [vmem:[#allocation2 + $0x20] sm:$0xff]
      %v1692 = vld [vmem:[#allocation2 + $0x28] sm:$0xff]
      %v1693 = vld [vmem:[#allocation2 + $0x30] sm:$0xff]
      %v1694 = vld [vmem:[#allocation2 + $0x38] sm:$0xff]
      %v1695 = vld [vmem:[#allocation2 + $0x40] sm:$0xff]
      %v1696 = vld [vmem:[#allocation2 + $0x48] sm:$0xff]
      %v1697 = vld [vmem:[#allocation2 + $0x50] sm:$0xff]
      %v1698 = vld [vmem:[#allocation2 + $0x58] sm:$0xff]
      %v1699 = vld [vmem:[#allocation2 + $0x60] sm:$0xff]
      %v1700 = vld [vmem:[#allocation2 + $0x68] sm:$0xff]
      %v1701 = vld [vmem:[#allocation2 + $0x70] sm:$0xff]
      %v1702 = vld [vmem:[#allocation2 + $0x78] sm:$0xff]
      %v1703 = vld [vmem:[#allocation2 + $0x80] sm:$0xff]
      %v1704 = vld [vmem:[#allocation2 + $0x88] sm:$0xff]
      %v1705 = vld [vmem:[#allocation2 + $0x90] sm:$0xff]
      %v1706 = vld [vmem:[#allocation2 + $0x98] sm:$0xff]
      %v1707 = vld [vmem:[#allocation2 + $0xa0] sm:$0xff]
      %v1708 = vld [vmem:[#allocation2 + $0xa8] sm:$0xff]
      %v1709 = vld [vmem:[#allocation2 + $0xb0] sm:$0xff]
      %v1710 = vld [vmem:[#allocation2 + $0xb8] sm:$0xff]
      %v1711 = vld [vmem:[#allocation2 + $0xc0] sm:$0xff]
      %v1712 = vld [vmem:[#allocation2 + $0xc8] sm:$0xff]
      %v1713 = vld [vmem:[#allocation2 + $0xd0] sm:$0xff]
      %v1714 = vld [vmem:[#allocation2 + $0xd8] sm:$0xff]
      %v1715 = vld [vmem:[#allocation2 + $0xe0] sm:$0xff]
      %v1716 = vld [vmem:[#allocation2 + $0xe8] sm:$0xff]
      %v1717 = vld [vmem:[#allocation2 + $0xf0] sm:$0xff]
      %v1718 = vld [vmem:[#allocation2 + $0xf8] sm:$0xff]
      %v1719 = vadd.f32 %v1687, %v1608
      %v1720 = vadd.f32 %v1688, %v1610
      %v1721 = vadd.f32 %v1689, %v1613
      %v1722 = vadd.f32 %v1690, %v1615
      %v1723 = vadd.f32 %v1691, %v1618
      %v1724 = vadd.f32 %v1692, %v1620
      %v1725 = vadd.f32 %v1693, %v1623
      %v1726 = vadd.f32 %v1694, %v1625
      %v1727 = vadd.f32 %v1695, %v1628
      %v1728 = vadd.f32 %v1696, %v1630
      %v1729 = vadd.f32 %v1697, %v1633
      %v1730 = vadd.f32 %v1698, %v1635
      %v1731 = vadd.f32 %v1699, %v1638
      %v1732 = vadd.f32 %v1700, %v1640
      %v1733 = vadd.f32 %v1701, %v1643
      %v1734 = vadd.f32 %v1702, %v1645
      %v1735 = vadd.f32 %v1703, %v1648
      %v1736 = vadd.f32 %v1704, %v1650
      %v1737 = vadd.f32 %v1705, %v1653
      %v1738 = vadd.f32 %v1706, %v1655
      %v1739 = vadd.f32 %v1707, %v1658
      %v1740 = vadd.f32 %v1708, %v1660
      %v1741 = vadd.f32 %v1709, %v1663
      %v1742 = vadd.f32 %v1710, %v1665
      %v1743 = vadd.f32 %v1711, %v1668
      %v1744 = vadd.f32 %v1712, %v1670
      %v1745 = vadd.f32 %v1713, %v1673
      %v1746 = vadd.f32 %v1714, %v1675
      %v1747 = vadd.f32 %v1715, %v1678
      %v1748 = vadd.f32 %v1716, %v1680
      %v1749 = vadd.f32 %v1717, %v1683
      %v1750 = vadd.f32 %v1718, %v1685
      %1751 = vst [vmem:[#allocation2] sm:$0xff] %v1719
      %1752 = vst [vmem:[#allocation2 + $0x8] sm:$0xff] %v1720
      %1753 = vst [vmem:[#allocation2 + $0x10] sm:$0xff] %v1721
      %1754 = vst [vmem:[#allocation2 + $0x18] sm:$0xff] %v1722
      %1755 = vst [vmem:[#allocation2 + $0x20] sm:$0xff] %v1723
      %1756 = vst [vmem:[#allocation2 + $0x28] sm:$0xff] %v1724
      %1757 = vst [vmem:[#allocation2 + $0x30] sm:$0xff] %v1725
      %1758 = vst [vmem:[#allocation2 + $0x38] sm:$0xff] %v1726
      %1759 = vst [vmem:[#allocation2 + $0x40] sm:$0xff] %v1727
      %1760 = vst [vmem:[#allocation2 + $0x48] sm:$0xff] %v1728
      %1761 = vst [vmem:[#allocation2 + $0x50] sm:$0xff] %v1729
      %1762 = vst [vmem:[#allocation2 + $0x58] sm:$0xff] %v1730
      %1763 = vst [vmem:[#allocation2 + $0x60] sm:$0xff] %v1731
      %1764 = vst [vmem:[#allocation2 + $0x68] sm:$0xff] %v1732
      %1765 = vst [vmem:[#allocation2 + $0x70] sm:$0xff] %v1733
      %1766 = vst [vmem:[#allocation2 + $0x78] sm:$0xff] %v1734
      %1767 = vst [vmem:[#allocation2 + $0x80] sm:$0xff] %v1735
      %1768 = vst [vmem:[#allocation2 + $0x88] sm:$0xff] %v1736
      %1769 = vst [vmem:[#allocation2 + $0x90] sm:$0xff] %v1737
      %1770 = vst [vmem:[#allocation2 + $0x98] sm:$0xff] %v1738
      %1771 = vst [vmem:[#allocation2 + $0xa0] sm:$0xff] %v1739
      %1772 = vst [vmem:[#allocation2 + $0xa8] sm:$0xff] %v1740
      %1773 = vst [vmem:[#allocation2 + $0xb0] sm:$0xff] %v1741
      %1774 = vst [vmem:[#allocation2 + $0xb8] sm:$0xff] %v1742
      %1775 = vst [vmem:[#allocation2 + $0xc0] sm:$0xff] %v1743
      %1776 = vst [vmem:[#allocation2 + $0xc8] sm:$0xff] %v1744
      %1777 = vst [vmem:[#allocation2 + $0xd0] sm:$0xff] %v1745
      %1778 = vst [vmem:[#allocation2 + $0xd8] sm:$0xff] %v1746
      %1779 = vst [vmem:[#allocation2 + $0xe0] sm:$0xff] %v1747
      %1780 = vst [vmem:[#allocation2 + $0xe8] sm:$0xff] %v1748
      %1781 = vst [vmem:[#allocation2 + $0xf0] sm:$0xff] %v1749
      %1782 = vst [vmem:[#allocation2 + $0xf8] sm:$0xff] %v1750
      %v1783 = vld [vmem:[#allocation2] sm:$0xff]
      %v1784 = vld [vmem:[#allocation2 + $0x8] sm:$0xff]
      %v1785 = vld [vmem:[#allocation2 + $0x10] sm:$0xff]
      %v1786 = vld [vmem:[#allocation2 + $0x18] sm:$0xff]
      %v1787 = vld [vmem:[#allocation2 + $0x20] sm:$0xff]
      %v1788 = vld [vmem:[#allocation2 + $0x28] sm:$0xff]
      %v1789 = vld [vmem:[#allocation2 + $0x30] sm:$0xff]
      %v1790 = vld [vmem:[#allocation2 + $0x38] sm:$0xff]
      %v1791 = vld [vmem:[#allocation2 + $0x40] sm:$0xff]
      %v1792 = vld [vmem:[#allocation2 + $0x48] sm:$0xff]
      %v1793 = vld [vmem:[#allocation2 + $0x50] sm:$0xff]
      %v1794 = vld [vmem:[#allocation2 + $0x58] sm:$0xff]
      %v1795 = vld [vmem:[#allocation2 + $0x60] sm:$0xff]
      %v1796 = vld [vmem:[#allocation2 + $0x68] sm:$0xff]
      %v1797 = vld [vmem:[#allocation2 + $0x70] sm:$0xff]
      %v1798 = vld [vmem:[#allocation2 + $0x78] sm:$0xff]
      %v1799 = vld [vmem:[#allocation2 + $0x80] sm:$0xff]
      %v1800 = vld [vmem:[#allocation2 + $0x88] sm:$0xff]
      %v1801 = vld [vmem:[#allocation2 + $0x90] sm:$0xff]
      %v1802 = vld [vmem:[#allocation2 + $0x98] sm:$0xff]
      %v1803 = vld [vmem:[#allocation2 + $0xa0] sm:$0xff]
      %v1804 = vld [vmem:[#allocation2 + $0xa8] sm:$0xff]
      %v1805 = vld [vmem:[#allocation2 + $0xb0] sm:$0xff]
      %v1806 = vld [vmem:[#allocation2 + $0xb8] sm:$0xff]
      %v1807 = vld [vmem:[#allocation2 + $0xc0] sm:$0xff]
      %v1808 = vld [vmem:[#allocation2 + $0xc8] sm:$0xff]
      %v1809 = vld [vmem:[#allocation2 + $0xd0] sm:$0xff]
      %v1810 = vld [vmem:[#allocation2 + $0xd8] sm:$0xff]
      %v1811 = vld [vmem:[#allocation2 + $0xe0] sm:$0xff]
      %v1812 = vld [vmem:[#allocation2 + $0xe8] sm:$0xff]
      %v1813 = vld [vmem:[#allocation2 + $0xf0] sm:$0xff]
      %v1814 = vld [vmem:[#allocation2 + $0xf8] sm:$0xff]
      %v1815 = vld [vmem:[%s2] sm:$0x1]
      %v1817 = vperm.slane %v1815, 0
      %v1819 = vadd.f32 %v1783, %v1817
      %v1820 = vadd.f32 %v1784, %v1817
      %v1821 = vadd.f32 %v1785, %v1817
      %v1822 = vadd.f32 %v1786, %v1817
      %v1823 = vadd.f32 %v1787, %v1817
      %v1824 = vadd.f32 %v1788, %v1817
      %v1825 = vadd.f32 %v1789, %v1817
      %v1826 = vadd.f32 %v1790, %v1817
      %v1827 = vadd.f32 %v1791, %v1817
      %v1828 = vadd.f32 %v1792, %v1817
      %v1829 = vadd.f32 %v1793, %v1817
      %v1830 = vadd.f32 %v1794, %v1817
      %v1831 = vadd.f32 %v1795, %v1817
      %v1832 = vadd.f32 %v1796, %v1817
      %v1833 = vadd.f32 %v1797, %v1817
      %v1834 = vadd.f32 %v1798, %v1817
      %v1835 = vadd.f32 %v1799, %v1817
      %v1836 = vadd.f32 %v1800, %v1817
      %v1837 = vadd.f32 %v1801, %v1817
      %v1838 = vadd.f32 %v1802, %v1817
      %v1839 = vadd.f32 %v1803, %v1817
      %v1840 = vadd.f32 %v1804, %v1817
      %v1841 = vadd.f32 %v1805, %v1817
      %v1842 = vadd.f32 %v1806, %v1817
      %v1843 = vadd.f32 %v1807, %v1817
      %v1844 = vadd.f32 %v1808, %v1817
      %v1845 = vadd.f32 %v1809, %v1817
      %v1846 = vadd.f32 %v1810, %v1817
      %v1847 = vadd.f32 %v1811, %v1817
      %v1848 = vadd.f32 %v1812, %v1817
      %v1849 = vadd.f32 %v1813, %v1817
      %v1850 = vadd.f32 %v1814, %v1817
      %v1851 = vmax.f32 %v1819, 0.0
      %v1852 = vmax.f32 %v1820, 0.0
      %v1853 = vmax.f32 %v1821, 0.0
      %v1854 = vmax.f32 %v1822, 0.0
      %v1855 = vmax.f32 %v1823, 0.0
      %v1856 = vmax.f32 %v1824, 0.0
      %v1857 = vmax.f32 %v1825, 0.0
      %v1858 = vmax.f32 %v1826, 0.0
      %v1859 = vmax.f32 %v1827, 0.0
      %v1860 = vmax.f32 %v1828, 0.0
      %v1861 = vmax.f32 %v1829, 0.0
      %v1862 = vmax.f32 %v1830, 0.0
      %v1863 = vmax.f32 %v1831, 0.0
      %v1864 = vmax.f32 %v1832, 0.0
      %v1865 = vmax.f32 %v1833, 0.0
      %v1866 = vmax.f32 %v1834, 0.0
      %v1867 = vmax.f32 %v1835, 0.0
      %v1868 = vmax.f32 %v1836, 0.0
      %v1869 = vmax.f32 %v1837, 0.0
      %v1870 = vmax.f32 %v1838, 0.0
      %v1871 = vmax.f32 %v1839, 0.0
      %v1872 = vmax.f32 %v1840, 0.0
      %v1873 = vmax.f32 %v1841, 0.0
      %v1874 = vmax.f32 %v1842, 0.0
      %v1875 = vmax.f32 %v1843, 0.0
      %v1876 = vmax.f32 %v1844, 0.0
      %v1877 = vmax.f32 %v1845, 0.0
      %v1878 = vmax.f32 %v1846, 0.0
      %v1879 = vmax.f32 %v1847, 0.0
      %v1880 = vmax.f32 %v1848, 0.0
      %v1881 = vmax.f32 %v1849, 0.0
      %v1882 = vmax.f32 %v1850, 0.0
      %v1883 = vadd.f32 %v1851, %v1852
      %v1884 = vrot.slane %v1883, 4
      %v1885 = vadd.f32 %v1883, %v1884
      %v1886 = vrot.slane %v1885, 2
      %v1887 = vadd.f32 %v1885, %v1886
      %v1888 = vrot.slane %v1887, 1
      %v1889 = vadd.f32 %v1887, %v1888
      %v1890 = vadd.f32 %v1853, %v1854
      %v1891 = vrot.slane %v1890, 4
      %v1892 = vadd.f32 %v1890, %v1891
      %v1893 = vrot.slane %v1892, 2
      %v1894 = vadd.f32 %v1892, %v1893
      %v1895 = vrot.slane %v1894, 1
      %v1896 = vadd.f32 %v1894, %v1895
      %v1897 = vadd.f32 %v1855, %v1856
      %v1898 = vrot.slane %v1897, 4
      %v1899 = vadd.f32 %v1897, %v1898
      %v1900 = vrot.slane %v1899, 2
      %v1901 = vadd.f32 %v1899, %v1900
      %v1902 = vrot.slane %v1901, 1
      %v1903 = vadd.f32 %v1901, %v1902
      %v1904 = vadd.f32 %v1857, %v1858
      %v1905 = vrot.slane %v1904, 4
      %v1906 = vadd.f32 %v1904, %v1905
      %v1907 = vrot.slane %v1906, 2
      %v1908 = vadd.f32 %v1906, %v1907
      %v1909 = vrot.slane %v1908, 1
      %v1910 = vadd.f32 %v1908, %v1909
      %v1911 = vadd.f32 %v1859, %v1860
      %v1912 = vrot.slane %v1911, 4
      %v1913 = vadd.f32 %v1911, %v1912
      %v1914 = vrot.slane %v1913, 2
      %v1915 = vadd.f32 %v1913, %v1914
      %v1916 = vrot.slane %v1915, 1
      %v1917 = vadd.f32 %v1915, %v1916
      %v1918 = vadd.f32 %v1861, %v1862
      %v1919 = vrot.slane %v1918, 4
      %v1920 = vadd.f32 %v1918, %v1919
      %v1921 = vrot.slane %v1920, 2
      %v1922 = vadd.f32 %v1920, %v1921
      %v1923 = vrot.slane %v1922, 1
      %v1924 = vadd.f32 %v1922, %v1923
      %v1925 = vadd.f32 %v1863, %v1864
      %v1926 = vrot.slane %v1925, 4
      %v1927 = vadd.f32 %v1925, %v1926
      %v1928 = vrot.slane %v1927, 2
      %v1929 = vadd.f32 %v1927, %v1928
      %v1930 = vrot.slane %v1929, 1
      %v1931 = vadd.f32 %v1929, %v1930
      %v1932 = vadd.f32 %v1865, %v1866
      %v1933 = vrot.slane %v1932, 4
      %v1934 = vadd.f32 %v1932, %v1933
      %v1935 = vrot.slane %v1934, 2
      %v1936 = vadd.f32 %v1934, %v1935
      %v1937 = vrot.slane %v1936, 1
      %v1938 = vadd.f32 %v1936, %v1937
      %v1939 = vadd.f32 %v1867, %v1868
      %v1940 = vrot.slane %v1939, 4
      %v1941 = vadd.f32 %v1939, %v1940
      %v1942 = vrot.slane %v1941, 2
      %v1943 = vadd.f32 %v1941, %v1942
      %v1944 = vrot.slane %v1943, 1
      %v1945 = vadd.f32 %v1943, %v1944
      %v1946 = vadd.f32 %v1869, %v1870
      %v1947 = vrot.slane %v1946, 4
      %v1948 = vadd.f32 %v1946, %v1947
      %v1949 = vrot.slane %v1948, 2
      %v1950 = vadd.f32 %v1948, %v1949
      %v1951 = vrot.slane %v1950, 1
      %v1952 = vadd.f32 %v1950, %v1951
      %v1953 = vadd.f32 %v1871, %v1872
      %v1954 = vrot.slane %v1953, 4
      %v1955 = vadd.f32 %v1953, %v1954
      %v1956 = vrot.slane %v1955, 2
      %v1957 = vadd.f32 %v1955, %v1956
      %v1958 = vrot.slane %v1957, 1
      %v1959 = vadd.f32 %v1957, %v1958
      %v1960 = vadd.f32 %v1873, %v1874
      %v1961 = vrot.slane %v1960, 4
      %v1962 = vadd.f32 %v1960, %v1961
      %v1963 = vrot.slane %v1962, 2
      %v1964 = vadd.f32 %v1962, %v1963
      %v1965 = vrot.slane %v1964, 1
      %v1966 = vadd.f32 %v1964, %v1965
      %v1967 = vadd.f32 %v1875, %v1876
      %v1968 = vrot.slane %v1967, 4
      %v1969 = vadd.f32 %v1967, %v1968
      %v1970 = vrot.slane %v1969, 2
      %v1971 = vadd.f32 %v1969, %v1970
      %v1972 = vrot.slane %v1971, 1
      %v1973 = vadd.f32 %v1971, %v1972
      %v1974 = vadd.f32 %v1877, %v1878
      %v1975 = vrot.slane %v1974, 4
      %v1976 = vadd.f32 %v1974, %v1975
      %v1977 = vrot.slane %v1976, 2
      %v1978 = vadd.f32 %v1976, %v1977
      %v1979 = vrot.slane %v1978, 1
      %v1980 = vadd.f32 %v1978, %v1979
      %v1981 = vadd.f32 %v1879, %v1880
      %v1982 = vrot.slane %v1981, 4
      %v1983 = vadd.f32 %v1981, %v1982
      %v1984 = vrot.slane %v1983, 2
      %v1985 = vadd.f32 %v1983, %v1984
      %v1986 = vrot.slane %v1985, 1
      %v1987 = vadd.f32 %v1985, %v1986
      %v1988 = vadd.f32 %v1881, %v1882
      %v1989 = vrot.slane %v1988, 4
      %v1990 = vadd.f32 %v1988, %v1989
      %v1991 = vrot.slane %v1990, 2
      %v1992 = vadd.f32 %v1990, %v1991
      %v1993 = vrot.slane %v1992, 1
      %v1994 = vadd.f32 %v1992, %v1993
      %v1995 = vld [vmem:[%s3] sm:$0xff]
      %v1996 = vld [vmem:[%s3 + $0x8] sm:$0xff]
      %v1997 = vld [vmem:[%s3 + $0x10] sm:$0xff]
      %v1998 = vld [vmem:[%s3 + $0x18] sm:$0xff]
      %v1999 = vld [vmem:[%s3 + $0x20] sm:$0xff]
      %v2000 = vld [vmem:[%s3 + $0x28] sm:$0xff]
      %v2001 = vld [vmem:[%s3 + $0x30] sm:$0xff]
      %v2002 = vld [vmem:[%s3 + $0x38] sm:$0xff]
      %v2003 = vld [vmem:[%s3 + $0x40] sm:$0xff]
      %v2004 = vld [vmem:[%s3 + $0x48] sm:$0xff]
      %v2005 = vld [vmem:[%s3 + $0x50] sm:$0xff]
      %v2006 = vld [vmem:[%s3 + $0x58] sm:$0xff]
      %v2007 = vld [vmem:[%s3 + $0x60] sm:$0xff]
      %v2008 = vld [vmem:[%s3 + $0x68] sm:$0xff]
      %v2009 = vld [vmem:[%s3 + $0x70] sm:$0xff]
      %v2010 = vld [vmem:[%s3 + $0x78] sm:$0xff]
      %v2011 = vld [vmem:[%s4] sm:$0x1]
      %v2013 = vperm.slane %v2011, 0
      %vm2031 = vcmask 1041409
      %v2032 = vsel %vm2031, %v1896, %v1889
      %vm2033 = vcmask 1042434
      %v2034 = vsel %vm2033, %v1903, %v2032
      %vm2035 = vcmask 1043459
      %v2036 = vsel %vm2035, %v1910, %v2034
      %vm2037 = vcmask 1044484
      %v2038 = vsel %vm2037, %v1917, %v2036
      %vm2039 = vcmask 1045509
      %v2040 = vsel %vm2039, %v1924, %v2038
      %vm2041 = vcmask 1046534
      %v2042 = vsel %vm2041, %v1931, %v2040
      %vm2043 = vcmask 1047559
      %v2044 = vsel %vm2043, %v1938, %v2042
      %v2045 = vsel %vm2031, %v1952, %v1945
      %v2046 = vsel %vm2033, %v1959, %v2045
      %v2047 = vsel %vm2035, %v1966, %v2046
      %v2048 = vsel %vm2037, %v1973, %v2047
      %v2049 = vsel %vm2039, %v1980, %v2048
      %v2050 = vsel %vm2041, %v1987, %v2049
      %v2051 = vsel %vm2043, %v1994, %v2050
      %2054 = vmatpush.msra.mxu0 %v2010
      %2055 = vmatpush.msra.mxu0 %v2009
      %2056 = vmatpush.msra.mxu0 %v2008
      %2057 = vmatpush.msra.mxu0 %v2007
      %2058 = vmatpush.msra.mxu0 %v2006
      %2059 = vmatpush.msra.mxu0 %v2005
      %2060 = vmatpush.msra.mxu0 %v2004
      %2061 = vmatpush.msra.mxu0 %v2003
      %2062 = vmatpush.msra.mxu0 %v2002
      %2063 = vmatpush.msra.mxu0 %v2001
      %2064 = vmatpush.msra.mxu0 %v2000
      %2065 = vmatpush.msra.mxu0 %v1999
      %2066 = vmatpush.msra.mxu0 %v1998
      %2067 = vmatpush.msra.mxu0 %v1997
      %2068 = vmatpush.msra.mxu0 %v1996
      %2069 = vmatpush.msra.mxu0 %v1995
      %2070 = vmatmul.f32.gmra.mxu0 %v2044
      %v2071 = vpop.f32.mrf.mxu0
      %v2072 = vadd.f32 %v2013, %v2071
      %2073 = vmatmul.f32.gmra.mxu0 %v2051
      %v2074 = vpop.f32.mrf.mxu0
      %v2075 = vadd.f32 %v2013, %v2074
      %2076 = vdwg.mxu0
      %v2077 = vmax.f32 %v2072, 0.0
      %v2078 = vmax.f32 %v2075, 0.0
      %v2079 = vld [vmem:[%s5] sm:$0xff]
      %v2080 = vld [vmem:[%s5 + $0x8] sm:$0xff]
      %v2081 = vld [vmem:[%s5 + $0x10] sm:$0xff]
      %v2082 = vld [vmem:[%s5 + $0x18] sm:$0xff]
      %v2083 = vld [vmem:[%s5 + $0x20] sm:$0xff]
      %v2084 = vld [vmem:[%s5 + $0x28] sm:$0xff]
      %v2085 = vld [vmem:[%s5 + $0x30] sm:$0xff]
      %v2086 = vld [vmem:[%s5 + $0x38] sm:$0xff]
      %v2087 = vld [vmem:[%s5 + $0x40] sm:$0xff]
      %v2088 = vld [vmem:[%s5 + $0x48] sm:$0xff]
      %v2089 = vld [vmem:[%s5 + $0x50] sm:$0xff]
      %v2090 = vld [vmem:[%s5 + $0x58] sm:$0xff]
      %v2091 = vld [vmem:[%s5 + $0x60] sm:$0xff]
      %v2092 = vld [vmem:[%s5 + $0x68] sm:$0xff]
      %v2093 = vld [vmem:[%s5 + $0x70] sm:$0xff]
      %v2094 = vld [vmem:[%s5 + $0x78] sm:$0xff]
      %v2095 = vld [vmem:[%s6] sm:$0x1]
      %v2097 = vperm.slane %v2095, 0
      %2099 = vmatpush.msra.mxu0 %v2094
      %2100 = vmatpush.msra.mxu0 %v2093
      %2101 = vmatpush.msra.mxu0 %v2092
      %2102 = vmatpush.msra.mxu0 %v2091
      %2103 = vmatpush.msra.mxu0 %v2090
      %2104 = vmatpush.msra.mxu0 %v2089
      %2105 = vmatpush.msra.mxu0 %v2088
      %2106 = vmatpush.msra.mxu0 %v2087
      %2107 = vmatpush.msra.mxu0 %v2086
      %2108 = vmatpush.msra.mxu0 %v2085
      %2109 = vmatpush.msra.mxu0 %v2084
      %2110 = vmatpush.msra.mxu0 %v2083
      %2111 = vmatpush.msra.mxu0 %v2082
      %2112 = vmatpush.msra.mxu0 %v2081
      %2113 = vmatpush.msra.mxu0 %v2080
      %2114 = vmatpush.msra.mxu0 %v2079
      %2115 = vmatmul.f32.gmra.mxu0 %v2077
      %v2116 = vpop.f32.mrf.mxu0
      %v2117 = vadd.f32 %v2097, %v2116
      %2118 = vmatmul.f32.gmra.mxu0 %v2078
      %v2119 = vpop.f32.mrf.mxu0
      %v2120 = vadd.f32 %v2097, %v2119
      %2121 = vdwg.mxu0
      %2122 = vst [vmem:[%s283] sm:$0xff] %v2117
      %2123 = vst [vmem:[%s283 + $0x8] sm:$0xff] %v2120
      %p2124 = scmp.lt.s32.totalorder %s18, 1
      %s2125 = scalar_select %p2124, %s18, 1
      %s2126 = smul.addr %s2125, 2
      %s2127 = smul.addr %s2126, 8
      %s2128 = scalar_lea.vmem %s7, %s2127
      // Predicated region
      $region49: #{transfer_learning_forward.1} parent=47 // pred_check
        %p2129 = pneg %p188
      $region50: #{transfer_learning_forward.1} parent=47 // pred_check_branch
        %2131 = sbr.rel (%p2129) target = $region52
      $region51: #{transfer_learning_forward.1} parent=47 // pred_region
        _
      $region52: #{transfer_learning_forward.1} parent=47 // pred_fallthru
        _
    $region48: #{transfer_learning_forward.1} parent=5 // pred_fallthru
      _
    %p2132 = scmp.le.s32.totalorder 2, %s13
    // Predicated region
    $region53: #{transfer_learning_forward.1} parent=5 // pred_check
      %p2133 = pneg %p2132
    $region54: #{transfer_learning_forward.1} parent=5 // pred_check_branch
      %2135 = sbr.rel (%p2133) target = $region56
    $region55: #{transfer_learning_forward.1} parent=5 // pred_region
      %s2136 = ssub.s32 %s13, 2
      // Predicated region
      $region57: #{transfer_learning_forward.1} parent=55 // pred_check
        %p2137 = pneg %p194
      $region58: #{transfer_learning_forward.1} parent=55 // pred_check_branch
        %2139 = sbr.rel (%p2137) target = $region60
      $region59: #{transfer_learning_forward.1} parent=55 // pred_region
        %p2140 = scmp.lt.s32.totalorder %s19, 1
        %s2141 = scalar_select %p2140, %s19, 1
        %s2142 = smul.addr %s2141, 2
        %s2143 = smul.addr %s2142, 8
        %s2144 = scalar_lea.vmem %s7, %s2143
      $region60: #{transfer_learning_forward.1} parent=55 // pred_fallthru
        _
    $region56: #{transfer_learning_forward.1} parent=5 // pred_fallthru
      _
  $region6: #{transfer_learning_forward.1} parent=0 // loop_footer
    %s17 = sadd.s32 1, %s13
  $region7: #{transfer_learning_forward.1} parent=0 // loop_footer_branch
    %12 = sbr.rel target = $region3
  $region8: #{transfer_learning_forward.1} parent=0 // loop_exit
    _

</llo_original>
